<compile_context>
chip_gen: v6e
topology: v6e:2x2x1
jax: 0.10.0
libtpu: 0.0.40
codegen_flags: <defaults>
</compile_context>

<pallas_src>
import functools

import jax
import jax.numpy as jnp
from jax.experimental import pallas as pl
from jax.experimental.pallas import tpu as pltpu


TM_MAX = 256  # row-tile size (multiple of 16 => valid bf16 sublane tiling)


def _round_up(x, m):
    return (x + m - 1) // m * m


# ---------------------------------------------------------------------------
# Pallas kernel: row-tiled fused 3x3 conv + bias + activation + weighted skip
# ---------------------------------------------------------------------------
def _conv3x3_kernel(xa_ref, xb_ref, w_ref, b_ref, *rest,
                    wp, tm, activation, has_skip, skip_w):
    if has_skip:
        skip_ref, out_ref = rest
    else:
        (out_ref,) = rest

    # (2*TM, Cin) window = this row tile plus the next one (covers the halo).
    window = jnp.concatenate([xa_ref[...], xb_ref[...]], axis=0)

    cout = out_ref.shape[1]
    acc = jnp.zeros((tm, cout), jnp.float32)
    # 9 taps of the 3x3 stencil = 9 statically-offset sublane slices of the
    # same VMEM window; each is one MXU matmul accumulated in f32.
    for dy in range(3):
        for dx in range(3):
            off = dy * wp + dx
            acc = acc + jnp.dot(window[off:off + tm, :],
                                w_ref[dy * 3 + dx],
                                preferred_element_type=jnp.float32)
    acc = acc + b_ref[...]                      # (1, Cout) broadcast, f32

    if activation == "relu":
        acc = jnp.maximum(acc, 0.0)
    elif activation == "tanh":
        acc = jnp.tanh(acc)

    if has_skip:
        acc = acc + skip_w * skip_ref[...].astype(jnp.float32)

    out_ref[...] = acc.astype(out_ref.dtype)


def conv3x3(x_nhwc, w, b, *, activation="none", skip_nhwc=None, skip_w=1.0,
            out_dtype=jnp.bfloat16):
    """3x3 conv, stride 1, pad 1 (PyTorch Conv2d semantics), via Pallas.

    x_nhwc: (N, H, W, Cin); w: (9, Cin, Cout) with tap index k = dy*3 + dx
    (i.e. torch weight[:, :, dy, dx].T); b: (Cout,).
    Fused epilogue: bias -> activation -> (+ skip_w * skip_nhwc).
    """
    N, H, W, Cin = x_nhwc.shape
    Cout = w.shape[-1]
    Wp = W + 2
    halo = 2 * Wp + 2                       # max stencil row offset (flat layout)
    rows_valid = N * (H + 2) * Wp

    tm = min(TM_MAX, _round_up(rows_valid, 16))
    tm = max(tm, _round_up(halo, 16))       # halo must fit inside one tile
    num_tiles = -(-rows_valid // tm)
    rows_out = num_tiles * tm

    # Lane-dense output for tiny channel counts (final conv): pad Cout -> 128
    # inside the kernel, slice it away outside.
    cout_k = Cout
    if Cout < 16:
        cout_k = 128
        w = jnp.pad(w, ((0, 0), (0, 0), (0, cout_k - Cout)))
        b = jnp.pad(b, ((0, cout_k - Cout),))

    # Padded-flat layout: zero-pad spatially, flatten (N, H+2, W+2) into rows.
    xp = jnp.pad(x_nhwc.astype(jnp.bfloat16), ((0, 0), (1, 1), (1, 1), (0, 0)))
    xflat = xp.reshape(rows_valid, Cin)
    # One extra row block so the halo view (block i+1) is always in bounds.
    xflat = jnp.pad(xflat, ((0, (num_tiles + 1) * tm - rows_valid), (0, 0)))

    wk = w.astype(jnp.bfloat16)                         # (9, Cin, cout_k)
    bk = b.astype(jnp.float32).reshape(1, cout_k)

    inputs = [xflat, xflat, wk, bk]
    in_specs = [
        pl.BlockSpec((tm, Cin), lambda i: (i, 0)),          # row tile i
        pl.BlockSpec((tm, Cin), lambda i: (i + 1, 0)),      # tile i+1 (halo)
        pl.BlockSpec((9, Cin, cout_k), lambda i: (0, 0, 0)),  # weights, resident
        pl.BlockSpec((1, cout_k), lambda i: (0, 0)),          # bias, resident
    ]

    has_skip = skip_nhwc is not None
    if has_skip:
        assert skip_nhwc.shape == (N, H, W, Cout) and cout_k == Cout
        sp = jnp.pad(skip_nhwc.astype(jnp.bfloat16),
                     ((0, 0), (1, 1), (1, 1), (0, 0)))
        sflat = jnp.pad(sp.reshape(rows_valid, Cout),
                        ((0, rows_out - rows_valid), (0, 0)))
        inputs.append(sflat)
        in_specs.append(pl.BlockSpec((tm, Cout), lambda i: (i, 0)))

    kernel = functools.partial(
        _conv3x3_kernel, wp=Wp, tm=tm, activation=activation,
        has_skip=has_skip, skip_w=float(skip_w))

    out = pl.pallas_call(
        kernel,
        out_shape=jax.ShapeDtypeStruct((rows_out, cout_k), out_dtype),
        grid=(num_tiles,),
        in_specs=in_specs,
        out_specs=pl.BlockSpec((tm, cout_k), lambda i: (i, 0)),
        compiler_params=pltpu.CompilerParams(
            dimension_semantics=("parallel",)),   # megacore-shardable on v7x
    )(*inputs)

    # Undo padded-flat layout; drop junk rows / padded output lanes.
    out = out[:rows_valid].reshape(N, H + 2, Wp, cout_k)
    return out[:, :H, :W, :Cout]


# ---------------------------------------------------------------------------
# Plain-JAX glue: pooling / upsampling (pure data movement)
# ---------------------------------------------------------------------------
def maxpool2(x):                                # MaxPool2d(kernel=2, stride=2)
    N, H, W, C = x.shape
    return x.reshape(N, H // 2, 2, W // 2, 2, C).max(axis=(2, 4))


def upsample2(x):                               # nearest-neighbor, scale 2
    return jnp.repeat(jnp.repeat(x, 2, axis=1), 2, axis=2)


# ---------------------------------------------------------------------------
# Parameters (deterministic, in-script init); weight layout (9, Cin, Cout)
# with k = dy*3 + dx  (== torch Conv2d weight[:, :, dy, dx].T).
# ---------------------------------------------------------------------------
ENC_CH = lambda n_in: [(n_in, 32), (32, 64), (64, 128),
                       (128, 256), (256, 512), (512, 512)]
DEC_CH = [(512, 512), (512, 256), (256, 128), (128, 64), (64, 32)]


def init_params(key, n_inputs, n_outputs):
    def conv_init(k, cin, cout):
        kw, kb = jax.random.split(k)
        scale = 1.0 / (9.0 * cin) ** 0.5
        w = jax.random.normal(kw, (9, cin, cout), jnp.float32) * scale
        b = jax.random.normal(kb, (cout,), jnp.float32) * scale
        return w, b

    enc_ch = ENC_CH(n_inputs)
    keys = jax.random.split(key, len(enc_ch) + len(DEC_CH) + 1)
    params = {}
    for i, (cin, cout) in enumerate(enc_ch):
        params[f"enc{i + 1}"] = conv_init(keys[i], cin, cout)
    for i, (cin, cout) in enumerate(DEC_CH):
        params[f"dec{i + 1}"] = conv_init(keys[len(enc_ch) + i], cin, cout)
    params["final"] = conv_init(keys[-1], 32, n_outputs)
    return params


# ---------------------------------------------------------------------------
# Forward pass (mirrors SegInNet.forward)
# ---------------------------------------------------------------------------
def seg_in_net(params, I_nchw, R_nchw, connect_weights=(1.0,) * 5):
    X = jnp.concatenate([I_nchw, R_nchw], axis=1)     # torch.cat([I, R], 1)
    X = jnp.transpose(X, (0, 2, 3, 1))                # NCHW -> NHWC

    sources = []
    for i in range(6):                                # encoders
        w, b = params[f"enc{i + 1}"]
        X = conv3x3(X, w, b, activation="relu")
        if i >= 1:                                    # enc1 has pooling=None
            X = maxpool2(X)
        sources.append(X)

    X = sources.pop()
    for i in range(5):                                # decoders with skips
        w, b = params[f"dec{i + 1}"]
        X = upsample2(X)
        X = conv3x3(X, w, b, activation="relu",
                    skip_nhwc=sources[-i - 1], skip_w=connect_weights[i])

    w, b = params["final"]                            # final conv + tanh
    X = conv3x3(X, w, b, activation="tanh", out_dtype=jnp.float32)
    return jnp.transpose(X, (0, 3, 1, 2))             # NHWC -> NCHW


# ---------------------------------------------------------------------------
if __name__ == "__main__":
    key = jax.random.PRNGKey(0)
    k_params, k_I, k_R, k_t = jax.random.split(key, 4)

    # --- lightweight self-check of the Pallas conv vs lax.conv (bf16 inputs) ---
    kx, kw, kb = jax.random.split(k_t, 3)
    xt = jax.random.normal(kx, (1, 16, 16, 8), jnp.float32)
    wt = jax.random.normal(kw, (9, 8, 32), jnp.float32) * 0.2
    bt = jax.random.normal(kb, (32,), jnp.float32) * 0.2
    got = conv3x3(xt, wt, bt, activation="none").astype(jnp.float32)
    ref = jax.lax.conv_general_dilated(
        xt.astype(jnp.bfloat16).astype(jnp.float32),
        wt.astype(jnp.bfloat16).astype(jnp.float32).reshape(3, 3, 8, 32),
        window_strides=(1, 1), padding="SAME",
        dimension_numbers=("NHWC", "HWIO", "NHWC")) + bt
    assert jnp.max(jnp.abs(got - ref)) < 5e-2, float(jnp.max(jnp.abs(got - ref)))

    # --- full SegInNet forward ---
    # 5 max-pools => spatial must be divisible by 32.
    nInputs, nOutputs = 4, 2
    I = jax.random.normal(k_I, (1, 2, 32, 32), jnp.float32)   # NCHW
    R = jax.random.normal(k_R, (1, 2, 32, 32), jnp.float32)   # NCHW

    params = init_params(k_params, nInputs, nOutputs)
    fwd = jax.jit(seg_in_net)
    out = jax.block_until_ready(fwd(params, I, R))

    assert out.shape == (1, nOutputs, 32, 32), out.shape
    assert bool(jnp.all(jnp.isfinite(out)))
    assert bool(jnp.all(jnp.abs(out) <= 1.0 + 1e-6))          # tanh range
    print("KERNEL_OK")
</pallas_src>

<mosaic_0001>
module attributes {stable_mosaic.version = 11 : i64} {
  func.func @_conv3x3_kernel(%arg0: i32, %arg1: memref<256x8xbf16, #tpu.memory_space<vmem>>, %arg2: memref<256x8xbf16, #tpu.memory_space<vmem>>, %arg3: memref<9x8x32xbf16, #tpu.memory_space<vmem>>, %arg4: memref<1x32xf32, #tpu.memory_space<vmem>>, %arg5: memref<256x32xbf16, #tpu.memory_space<vmem>>) attributes {dimension_semantics = [#tpu.dimension_semantics<parallel>], iteration_bounds = array<i64: 2>, scalar_prefetch = 0 : i64, scratch_operands = 0 : i64, tpu.core_type = #tpu.core_type<tc>, window_params = [{transform_indices = @transform_0, window_bounds = array<i64: 256, 8>}, {transform_indices = @transform_1, window_bounds = array<i64: 256, 8>}, {pipeline_mode = #tpu.pipeline_mode<synchronous>, transform_indices = @transform_2, window_bounds = array<i64: 9, 8, 32>}, {pipeline_mode = #tpu.pipeline_mode<synchronous>, transform_indices = @transform_3, window_bounds = array<i64: 1, 32>}, {transform_indices = @transform_4, window_bounds = array<i64: 256, 32>}]} {
    %c0 = arith.constant 0 : index
    %c0_0 = arith.constant 0 : index
    %0 = vector.load %arg1[%c0, %c0_0] : memref<256x8xbf16, #tpu.memory_space<vmem>>, vector<256x8xbf16>
    %c0_1 = arith.constant 0 : index
    %c0_2 = arith.constant 0 : index
    %1 = vector.load %arg2[%c0_1, %c0_2] : memref<256x8xbf16, #tpu.memory_space<vmem>>, vector<256x8xbf16>
    %2 = tpu.concatenate %0, %1 in 0 : vector<256x8xbf16>, vector<256x8xbf16> -> vector<512x8xbf16>
    %cst = arith.constant 0.000000e+00 : f32
    %3 = vector.broadcast %cst : f32 to vector<256x32xf32>
    %4 = vector.extract_strided_slice %2 {offsets = [0, 0], sizes = [256, 8], strides = [1, 1]} : vector<512x8xbf16> to vector<256x8xbf16>
    %c0_3 = arith.constant 0 : index
    %c0_4 = arith.constant 0 : index
    %c0_5 = arith.constant 0 : index
    %5 = vector.load %arg3[%c0_3, %c0_4, %c0_5] : memref<9x8x32xbf16, #tpu.memory_space<vmem>>, vector<1x8x32xbf16>
    %6 = vector.shape_cast %5 : vector<1x8x32xbf16> to vector<8x32xbf16>
    %cst_6 = arith.constant dense<0.000000e+00> : vector<256x32xf32>
    %7 = tpu.matmul %4, %6, %cst_6 {dimension_numbers = #tpu.dot_dimension_numbers<[1], [0], [0], [1], [0, 0, 1, 1], [], []>} : vector<256x8xbf16>, vector<8x32xbf16>, vector<256x32xf32> -> vector<256x32xf32>
    %8 = arith.addf %3, %7 : vector<256x32xf32>
    %9 = vector.extract_strided_slice %2 {offsets = [1, 0], sizes = [256, 8], strides = [1, 1]} : vector<512x8xbf16> to vector<256x8xbf16>
    %c1 = arith.constant 1 : index
    %c0_7 = arith.constant 0 : index
    %c0_8 = arith.constant 0 : index
    %10 = vector.load %arg3[%c1, %c0_7, %c0_8] : memref<9x8x32xbf16, #tpu.memory_space<vmem>>, vector<1x8x32xbf16>
    %11 = vector.shape_cast %10 : vector<1x8x32xbf16> to vector<8x32xbf16>
    %cst_9 = arith.constant dense<0.000000e+00> : vector<256x32xf32>
    %12 = tpu.matmul %9, %11, %cst_9 {dimension_numbers = #tpu.dot_dimension_numbers<[1], [0], [0], [1], [0, 0, 1, 1], [], []>} : vector<256x8xbf16>, vector<8x32xbf16>, vector<256x32xf32> -> vector<256x32xf32>
    %13 = arith.addf %8, %12 : vector<256x32xf32>
    %14 = vector.extract_strided_slice %2 {offsets = [2, 0], sizes = [256, 8], strides = [1, 1]} : vector<512x8xbf16> to vector<256x8xbf16>
    %c2 = arith.constant 2 : index
    %c0_10 = arith.constant 0 : index
    %c0_11 = arith.constant 0 : index
    %15 = vector.load %arg3[%c2, %c0_10, %c0_11] : memref<9x8x32xbf16, #tpu.memory_space<vmem>>, vector<1x8x32xbf16>
    %16 = vector.shape_cast %15 : vector<1x8x32xbf16> to vector<8x32xbf16>
    %cst_12 = arith.constant dense<0.000000e+00> : vector<256x32xf32>
    %17 = tpu.matmul %14, %16, %cst_12 {dimension_numbers = #tpu.dot_dimension_numbers<[1], [0], [0], [1], [0, 0, 1, 1], [], []>} : vector<256x8xbf16>, vector<8x32xbf16>, vector<256x32xf32> -> vector<256x32xf32>
    %18 = arith.addf %13, %17 : vector<256x32xf32>
    %19 = vector.extract_strided_slice %2 {offsets = [18, 0], sizes = [256, 8], strides = [1, 1]} : vector<512x8xbf16> to vector<256x8xbf16>
    %c3 = arith.constant 3 : index
    %c0_13 = arith.constant 0 : index
    %c0_14 = arith.constant 0 : index
    %20 = vector.load %arg3[%c3, %c0_13, %c0_14] : memref<9x8x32xbf16, #tpu.memory_space<vmem>>, vector<1x8x32xbf16>
    %21 = vector.shape_cast %20 : vector<1x8x32xbf16> to vector<8x32xbf16>
    %cst_15 = arith.constant dense<0.000000e+00> : vector<256x32xf32>
    %22 = tpu.matmul %19, %21, %cst_15 {dimension_numbers = #tpu.dot_dimension_numbers<[1], [0], [0], [1], [0, 0, 1, 1], [], []>} : vector<256x8xbf16>, vector<8x32xbf16>, vector<256x32xf32> -> vector<256x32xf32>
    %23 = arith.addf %18, %22 : vector<256x32xf32>
    %24 = vector.extract_strided_slice %2 {offsets = [19, 0], sizes = [256, 8], strides = [1, 1]} : vector<512x8xbf16> to vector<256x8xbf16>
    %c4 = arith.constant 4 : index
    %c0_16 = arith.constant 0 : index
    %c0_17 = arith.constant 0 : index
    %25 = vector.load %arg3[%c4, %c0_16, %c0_17] : memref<9x8x32xbf16, #tpu.memory_space<vmem>>, vector<1x8x32xbf16>
    %26 = vector.shape_cast %25 : vector<1x8x32xbf16> to vector<8x32xbf16>
    %cst_18 = arith.constant dense<0.000000e+00> : vector<256x32xf32>
    %27 = tpu.matmul %24, %26, %cst_18 {dimension_numbers = #tpu.dot_dimension_numbers<[1], [0], [0], [1], [0, 0, 1, 1], [], []>} : vector<256x8xbf16>, vector<8x32xbf16>, vector<256x32xf32> -> vector<256x32xf32>
    %28 = arith.addf %23, %27 : vector<256x32xf32>
    %29 = vector.extract_strided_slice %2 {offsets = [20, 0], sizes = [256, 8], strides = [1, 1]} : vector<512x8xbf16> to vector<256x8xbf16>
    %c5 = arith.constant 5 : index
    %c0_19 = arith.constant 0 : index
    %c0_20 = arith.constant 0 : index
    %30 = vector.load %arg3[%c5, %c0_19, %c0_20] : memref<9x8x32xbf16, #tpu.memory_space<vmem>>, vector<1x8x32xbf16>
    %31 = vector.shape_cast %30 : vector<1x8x32xbf16> to vector<8x32xbf16>
    %cst_21 = arith.constant dense<0.000000e+00> : vector<256x32xf32>
    %32 = tpu.matmul %29, %31, %cst_21 {dimension_numbers = #tpu.dot_dimension_numbers<[1], [0], [0], [1], [0, 0, 1, 1], [], []>} : vector<256x8xbf16>, vector<8x32xbf16>, vector<256x32xf32> -> vector<256x32xf32>
    %33 = arith.addf %28, %32 : vector<256x32xf32>
    %34 = vector.extract_strided_slice %2 {offsets = [36, 0], sizes = [256, 8], strides = [1, 1]} : vector<512x8xbf16> to vector<256x8xbf16>
    %c6 = arith.constant 6 : index
    %c0_22 = arith.constant 0 : index
    %c0_23 = arith.constant 0 : index
    %35 = vector.load %arg3[%c6, %c0_22, %c0_23] : memref<9x8x32xbf16, #tpu.memory_space<vmem>>, vector<1x8x32xbf16>
    %36 = vector.shape_cast %35 : vector<1x8x32xbf16> to vector<8x32xbf16>
    %cst_24 = arith.constant dense<0.000000e+00> : vector<256x32xf32>
    %37 = tpu.matmul %34, %36, %cst_24 {dimension_numbers = #tpu.dot_dimension_numbers<[1], [0], [0], [1], [0, 0, 1, 1], [], []>} : vector<256x8xbf16>, vector<8x32xbf16>, vector<256x32xf32> -> vector<256x32xf32>
    %38 = arith.addf %33, %37 : vector<256x32xf32>
    %39 = vector.extract_strided_slice %2 {offsets = [37, 0], sizes = [256, 8], strides = [1, 1]} : vector<512x8xbf16> to vector<256x8xbf16>
    %c7 = arith.constant 7 : index
    %c0_25 = arith.constant 0 : index
    %c0_26 = arith.constant 0 : index
    %40 = vector.load %arg3[%c7, %c0_25, %c0_26] : memref<9x8x32xbf16, #tpu.memory_space<vmem>>, vector<1x8x32xbf16>
    %41 = vector.shape_cast %40 : vector<1x8x32xbf16> to vector<8x32xbf16>
    %cst_27 = arith.constant dense<0.000000e+00> : vector<256x32xf32>
    %42 = tpu.matmul %39, %41, %cst_27 {dimension_numbers = #tpu.dot_dimension_numbers<[1], [0], [0], [1], [0, 0, 1, 1], [], []>} : vector<256x8xbf16>, vector<8x32xbf16>, vector<256x32xf32> -> vector<256x32xf32>
    %43 = arith.addf %38, %42 : vector<256x32xf32>
    %44 = vector.extract_strided_slice %2 {offsets = [38, 0], sizes = [256, 8], strides = [1, 1]} : vector<512x8xbf16> to vector<256x8xbf16>
    %c8 = arith.constant 8 : index
    %c0_28 = arith.constant 0 : index
    %c0_29 = arith.constant 0 : index
    %45 = vector.load %arg3[%c8, %c0_28, %c0_29] : memref<9x8x32xbf16, #tpu.memory_space<vmem>>, vector<1x8x32xbf16>
    %46 = vector.shape_cast %45 : vector<1x8x32xbf16> to vector<8x32xbf16>
    %cst_30 = arith.constant dense<0.000000e+00> : vector<256x32xf32>
    %47 = tpu.matmul %44, %46, %cst_30 {dimension_numbers = #tpu.dot_dimension_numbers<[1], [0], [0], [1], [0, 0, 1, 1], [], []>} : vector<256x8xbf16>, vector<8x32xbf16>, vector<256x32xf32> -> vector<256x32xf32>
    %48 = arith.addf %43, %47 : vector<256x32xf32>
    %c0_31 = arith.constant 0 : index
    %c0_32 = arith.constant 0 : index
    %49 = vector.load %arg4[%c0_31, %c0_32] : memref<1x32xf32, #tpu.memory_space<vmem>>, vector<1x32xf32>
    %50 = vector.broadcast %49 : vector<1x32xf32> to vector<256x32xf32>
    %51 = arith.addf %48, %50 : vector<256x32xf32>
    %52 = arith.truncf %51 : vector<256x32xf32> to vector<256x32xbf16>
    %c0_33 = arith.constant 0 : index
    %c0_34 = arith.constant 0 : index
    %53 = vector.load %arg5[%c0_33, %c0_34] : memref<256x32xbf16, #tpu.memory_space<vmem>>, vector<256x32xbf16>
    tpu.vector_store %arg5[%c0_33, %c0_34], %52 {strides = array<i32>} : memref<256x32xbf16, #tpu.memory_space<vmem>>, vector<256x32xbf16>,
    return
  }
  func.func @transform_0(%arg0: i32) -> (i32, i32) {
    %c0_i32 = arith.constant 0 : i32
    %c0_i32_0 = arith.constant 0 : i32
    return %arg0, %c0_i32 : i32, i32
  }
  func.func @transform_1(%arg0: i32) -> (i32, i32) {
    %c1_i32 = arith.constant 1 : i32
    %0 = arith.addi %arg0, %c1_i32 : i32
    %c0_i32 = arith.constant 0 : i32
    %c0_i32_0 = arith.constant 0 : i32
    return %0, %c0_i32 : i32, i32
  }
  func.func @transform_2(%arg0: i32) -> (i32, i32, i32) {
    %c0_i32 = arith.constant 0 : i32
    %c0_i32_0 = arith.constant 0 : i32
    %c0_i32_1 = arith.constant 0 : i32
    %c0_i32_2 = arith.constant 0 : i32
    return %c0_i32, %c0_i32_0, %c0_i32_1 : i32, i32, i32
  }
  func.func @transform_3(%arg0: i32) -> (i32, i32) {
    %c0_i32 = arith.constant 0 : i32
    %c0_i32_0 = arith.constant 0 : i32
    %c0_i32_1 = arith.constant 0 : i32
    return %c0_i32, %c0_i32_0 : i32, i32
  }
  func.func @transform_4(%arg0: i32) -> (i32, i32) {
    %c0_i32 = arith.constant 0 : i32
    %c0_i32_0 = arith.constant 0 : i32
    return %arg0, %c0_i32 : i32, i32
  }
}

</mosaic_0001>

<llo_original>
// kernel: tpu_custom_call.1
$region0: #{tpu_custom_call.1}
  #allocation0 [shape = 'u32[]', space=smem, size = 0x4, offset = 0x4, fixed_abs, tag = 'smem constant byte address 0x4 - core index']
  #allocation1 [shape = 'u32[144,128]{1,0:T(1,128)}', space=vmem, size = 0x12000, scoped, tag = 'internal scratch']
  %s0 = inlined_call_operand.vmem [shape: bf16[768,8], index: 0, kind: input, shape index: {}]
  %s1 = inlined_call_operand.vmem [shape: bf16[768,8], index: 1, kind: input, shape index: {}]
  %s2 = inlined_call_operand.vmem [shape: bf16[9,8,32], index: 2, kind: input, shape index: {}]
  %s3 = inlined_call_operand.vmem [shape: f32[1,32], index: 3, kind: input, shape index: {}]
  %s4 = inlined_call_operand.vmem [shape: bf16[512,32], index: 4, kind: output, shape index: {}]
  %s5 = sld [smem:[#allocation0]]
  $region49: #{tpu_custom_call.1} parent=0
    _
  %s7 = ssub.s32 1, %s5
  %s8 = scalar_select 0, %s7, %s5
  loop: start=0, step=1, limit=4
  $region2: #{tpu_custom_call.1} parent=0 // loop_pre_header
    _
  $region3: #{tpu_custom_call.1} parent=0 // loop_header
    %s10 = sphi 0, %s14
    %p11 = scmp.ge.s32.totalorder %s10, 4
    %s20 = sphi 0, %s22
    %s23 = sphi 0, %s20
    %s24 = sphi 0, %s23
    %s40 = sphi 0, %s24
    %s48 = sphi 0, %s50
    %s51 = sphi 0, %s48
    %s52 = sphi 0, %s51
    %s68 = sphi 0, %s52
    %s72 = sphi 0, %s72
    %s74 = sphi 0, %s72
    %s75 = sphi 0, %s74
    %s89 = sphi 0, %s75
    %s93 = sphi 0, %s93
    %s95 = sphi 0, %s93
    %s96 = sphi 0, %s95
    %s110 = sphi 0, %s96
    %s116 = sphi 0, %s118
    %s119 = sphi 0, %s116
    %s120 = sphi 0, %s119
    %s136 = sphi 0, %s120
  $region4: #{tpu_custom_call.1} parent=0 // loop_header_branch
    %13 = sbr.rel (%p11) target = $region8
  $region5: #{tpu_custom_call.1} parent=0 // loop_body
    %s15 = ssub.s32 %s10, 1
    %s16 = ssub.s32 %s10, 2
    %s17 = sadd.s32 %s10, 1
    %s18 = ssub.s32 %s10, %s17
    %p19 = scmp.eq.s32.totalorder %s18, 0
    %s21 = sadd.s32 %s20, 1
    %s22 = scalar_select %p19, %s20, %s21
    %p25 = pneg %p19
    %p26 = scmp.eq.s32.totalorder %s10, 1
    %p27 = por %p25, %p26
    %p28 = scmp.ne.s32.totalorder %s20, %s23
    %p29 = scmp.eq.s32.totalorder %s10, 0
    %p30 = por %p28, %p29
    %p31 = scmp.ne.s32.totalorder %s20, %s23
    %p32 = scmp.eq.s32.totalorder %s15, 1
    %p33 = por %p31, %p32
    %p34 = scmp.ne.s32.totalorder %s23, %s24
    %p35 = scmp.eq.s32.totalorder %s15, 0
    %p36 = por %p34, %p35
    %p37 = scmp.ne.s32.totalorder %s23, %s24
    %p38 = scmp.eq.s32.totalorder %s16, 1
    %p39 = por %p37, %p38
    %p41 = scmp.ne.s32.totalorder %s24, %s40
    %p42 = scmp.eq.s32.totalorder %s16, 0
    %p43 = por %p41, %p42
    %s44 = sadd.s32 %s10, 1
    %s45 = sadd.s32 %s17, 1
    %s46 = ssub.s32 %s44, %s45
    %p47 = scmp.eq.s32.totalorder %s46, 0
    %s49 = sadd.s32 %s48, 1
    %s50 = scalar_select %p47, %s48, %s49
    %p53 = pneg %p47
    %p54 = scmp.eq.s32.totalorder %s10, 1
    %p55 = por %p53, %p54
    %p56 = scmp.ne.s32.totalorder %s48, %s51
    %p57 = scmp.eq.s32.totalorder %s10, 0
    %p58 = por %p56, %p57
    %p59 = scmp.ne.s32.totalorder %s48, %s51
    %p60 = scmp.eq.s32.totalorder %s15, 1
    %p61 = por %p59, %p60
    %p62 = scmp.ne.s32.totalorder %s51, %s52
    %p63 = scmp.eq.s32.totalorder %s15, 0
    %p64 = por %p62, %p63
    %p65 = scmp.ne.s32.totalorder %s51, %s52
    %p66 = scmp.eq.s32.totalorder %s16, 1
    %p67 = por %p65, %p66
    %p69 = scmp.ne.s32.totalorder %s52, %s68
    %p70 = scmp.eq.s32.totalorder %s16, 0
    %p71 = por %p69, %p70
    %s73 = sadd.s32 %s72, 1
    %p76 = scmp.eq.s32.totalorder %s10, 1
    %p77 = scmp.ne.s32.totalorder %s72, %s74
    %p78 = scmp.eq.s32.totalorder %s10, 0
    %p79 = por %p77, %p78
    %p80 = scmp.ne.s32.totalorder %s72, %s74
    %p81 = scmp.eq.s32.totalorder %s15, 1
    %p82 = por %p80, %p81
    %p83 = scmp.ne.s32.totalorder %s74, %s75
    %p84 = scmp.eq.s32.totalorder %s15, 0
    %p85 = por %p83, %p84
    %p86 = scmp.ne.s32.totalorder %s74, %s75
    %p87 = scmp.eq.s32.totalorder %s16, 1
    %p88 = por %p86, %p87
    %p90 = scmp.ne.s32.totalorder %s75, %s89
    %p91 = scmp.eq.s32.totalorder %s16, 0
    %p92 = por %p90, %p91
    %s94 = sadd.s32 %s93, 1
    %p97 = scmp.eq.s32.totalorder %s10, 1
    %p98 = scmp.ne.s32.totalorder %s93, %s95
    %p99 = scmp.eq.s32.totalorder %s10, 0
    %p100 = por %p98, %p99
    %p101 = scmp.ne.s32.totalorder %s93, %s95
    %p102 = scmp.eq.s32.totalorder %s15, 1
    %p103 = por %p101, %p102
    %p104 = scmp.ne.s32.totalorder %s95, %s96
    %p105 = scmp.eq.s32.totalorder %s15, 0
    %p106 = por %p104, %p105
    %p107 = scmp.ne.s32.totalorder %s95, %s96
    %p108 = scmp.eq.s32.totalorder %s16, 1
    %p109 = por %p107, %p108
    %p111 = scmp.ne.s32.totalorder %s96, %s110
    %p112 = scmp.eq.s32.totalorder %s16, 0
    %p113 = por %p111, %p112
    %s114 = ssub.s32 %s10, %s17
    %p115 = scmp.eq.s32.totalorder %s114, 0
    %s117 = sadd.s32 %s116, 1
    %s118 = scalar_select %p115, %s116, %s117
    %p121 = pneg %p115
    %p122 = scmp.eq.s32.totalorder %s10, 1
    %p123 = por %p121, %p122
    %p124 = scmp.ne.s32.totalorder %s116, %s119
    %p125 = scmp.eq.s32.totalorder %s10, 0
    %p126 = por %p124, %p125
    %p127 = scmp.ne.s32.totalorder %s116, %s119
    %p128 = scmp.eq.s32.totalorder %s15, 1
    %p129 = por %p127, %p128
    %p130 = scmp.ne.s32.totalorder %s119, %s120
    %p131 = scmp.eq.s32.totalorder %s15, 0
    %p132 = por %p130, %p131
    %p133 = scmp.ne.s32.totalorder %s119, %s120
    %p134 = scmp.eq.s32.totalorder %s16, 1
    %p135 = por %p133, %p134
    %p137 = scmp.ne.s32.totalorder %s120, %s136
    %p138 = scmp.eq.s32.totalorder %s16, 0
    %p139 = por %p137, %p138
    %p140 = scmp.le.s32.totalorder 1, %s10
    %p141 = scmp.lt.s32.totalorder %s10, 3
    %p142 = pnand %p140, %p141
    %p143 = pneg %p142
    // Predicated region
    $region9: #{tpu_custom_call.1} parent=5 // pred_check
      _
    $region10: #{tpu_custom_call.1} parent=5 // pred_check_branch
      %145 = sbr.rel (%p142) target = $region12
    $region11: #{tpu_custom_call.1} parent=5 // pred_region
      %s146 = ssub.s32 %s10, 1
      // Predicated region
      $region13: #{tpu_custom_call.1} parent=11 // pred_check
        %p147 = pneg %p85
      $region14: #{tpu_custom_call.1} parent=11 // pred_check_branch
        %149 = sbr.rel (%p147) target = $region16
      $region15: #{tpu_custom_call.1} parent=11 // pred_region
        _
      $region16: #{tpu_custom_call.1} parent=11 // pred_fallthru
        _
      // Predicated region
      $region17: #{tpu_custom_call.1} parent=11 // pred_check
        %p150 = pneg %p106
      $region18: #{tpu_custom_call.1} parent=11 // pred_check_branch
        %152 = sbr.rel (%p150) target = $region20
      $region19: #{tpu_custom_call.1} parent=11 // pred_region
        _
      $region20: #{tpu_custom_call.1} parent=11 // pred_fallthru
        _
    $region12: #{tpu_custom_call.1} parent=5 // pred_fallthru
      _
    %p153 = scmp.lt.s32.totalorder %s10, 2
    // Predicated region
    $region21: #{tpu_custom_call.1} parent=5 // pred_check
      %p154 = pneg %p153
    $region22: #{tpu_custom_call.1} parent=5 // pred_check_branch
      %156 = sbr.rel (%p154) target = $region24
    $region23: #{tpu_custom_call.1} parent=5 // pred_region
      // Predicated region
      $region25: #{tpu_custom_call.1} parent=23 // pred_check
        %p157 = pneg %p30
      $region26: #{tpu_custom_call.1} parent=23 // pred_check_branch
        %159 = sbr.rel (%p157) target = $region28
      $region27: #{tpu_custom_call.1} parent=23 // pred_region
        %s160 = smul.u32 32, %s10
        %p161 = scmp.lt.s32.totalorder %s160, 95
        %s162 = scalar_select %p161, %s160, 95
        %s163 = smul.addr %s162, 4
        %s164 = scalar_lea.vmem %s0, %s163
        %s165 = smul.u32 32, %s10
      $region28: #{tpu_custom_call.1} parent=23 // pred_fallthru
        _
      // Predicated region
      $region29: #{tpu_custom_call.1} parent=23 // pred_check
        %p166 = pneg %p58
      $region30: #{tpu_custom_call.1} parent=23 // pred_check_branch
        %168 = sbr.rel (%p166) target = $region32
      $region31: #{tpu_custom_call.1} parent=23 // pred_region
        %s169 = sadd.s32 %s10, 1
        %s170 = smul.u32 32, %s169
        %p171 = scmp.lt.s32.totalorder %s170, 95
        %s172 = scalar_select %p171, %s170, 95
        %s173 = smul.addr %s172, 4
        %s174 = scalar_lea.vmem %s1, %s173
        %s175 = sadd.s32 %s10, 1
        %s176 = smul.u32 32, %s175
      $region32: #{tpu_custom_call.1} parent=23 // pred_fallthru
        _
    $region24: #{tpu_custom_call.1} parent=5 // pred_fallthru
      _
    %p177 = scmp.le.s32.totalorder 1, %s10
    %p178 = scmp.lt.s32.totalorder %s10, 3
    %p179 = pnand %p177, %p178
    %p180 = pneg %p179
    // Predicated region
    $region33: #{tpu_custom_call.1} parent=5 // pred_check
      _
    $region34: #{tpu_custom_call.1} parent=5 // pred_check_branch
      %182 = sbr.rel (%p179) target = $region36
    $region35: #{tpu_custom_call.1} parent=5 // pred_region
      %s183 = ssub.s32 %s10, 1
      %s184 = smul.u32 32, %s15
      %p185 = scmp.lt.s32.totalorder %s184, 95
      %s186 = scalar_select %p185, %s184, 95
      %s187 = smul.addr %s186, 4
      %s188 = scalar_lea.vmem %s0, %s187
      %p189 = pneg %p36
      %p190 = pneg %p33
      %s191 = sadd.s32 %s15, 1
      %s192 = smul.u32 32, %s191
      %p193 = scmp.lt.s32.totalorder %s192, 95
      %s194 = scalar_select %p193, %s192, 95
      %s195 = smul.addr %s194, 4
      %s196 = scalar_lea.vmem %s1, %s195
      %p197 = pneg %p64
      %p198 = pneg %p61
      %p199 = pneg %p85
      %p200 = pneg %p82
      %p201 = pneg %p106
      %p202 = pneg %p103
      %p203 = pneg %p132
      %p204 = pneg %p129
      %s205 = smul.u32 32, %s15
      %p206 = scmp.lt.s32.totalorder %s205, 63
      %s207 = scalar_select %p206, %s205, 63
      %s208 = smul.addr %s207, 4
      %s209 = scalar_lea.vmem %s4, %s208
      %s210 = smul.u32 32, %s15
      %p211 = scmp.lt.s32.totalorder %s210, 95
      %s212 = scalar_select %p211, %s210, 95
      %s213 = smul.addr %s212, 4
      %s214 = scalar_lea.vmem %s0, %s213
      %s215 = smul.u32 32, %s15
      %s216 = sadd.s32 %s15, 1
      %s217 = smul.u32 32, %s216
      %p218 = scmp.lt.s32.totalorder %s217, 95
      %s219 = scalar_select %p218, %s217, 95
      %s220 = smul.addr %s219, 4
      %s221 = scalar_lea.vmem %s1, %s220
      %s222 = sadd.s32 %s15, 1
      %s223 = smul.u32 32, %s222
      %s224 = smul.u32 32, %s15
      %p225 = scmp.lt.s32.totalorder %s224, 63
      %s226 = scalar_select %p225, %s224, 63
      %s227 = smul.addr %s226, 4
      %s228 = scalar_lea.vmem %s4, %s227
      %s229 = smul.u32 32, %s15
      %v231 = vld [vmem:[%s214] sm:$0xf]
      %v232 = vld [vmem:[%s214 + $0x4] sm:$0xf]
      %v233 = vld [vmem:[%s214 + $0x8] sm:$0xf]
      %v234 = vld [vmem:[%s214 + $0xc] sm:$0xf]
      %v235 = vld [vmem:[%s214 + $0x10] sm:$0xf]
      %v236 = vld [vmem:[%s214 + $0x14] sm:$0xf]
      %v237 = vld [vmem:[%s214 + $0x18] sm:$0xf]
      %v238 = vld [vmem:[%s214 + $0x1c] sm:$0xf]
      %v239 = vld [vmem:[%s214 + $0x20] sm:$0xf]
      %v240 = vld [vmem:[%s214 + $0x24] sm:$0xf]
      %v241 = vld [vmem:[%s214 + $0x28] sm:$0xf]
      %v242 = vld [vmem:[%s214 + $0x2c] sm:$0xf]
      %v243 = vld [vmem:[%s214 + $0x30] sm:$0xf]
      %v244 = vld [vmem:[%s214 + $0x34] sm:$0xf]
      %v245 = vld [vmem:[%s214 + $0x38] sm:$0xf]
      %v246 = vld [vmem:[%s214 + $0x3c] sm:$0xf]
      %v247 = vld [vmem:[%s214 + $0x40] sm:$0xf]
      %v248 = vld [vmem:[%s214 + $0x44] sm:$0xf]
      %v249 = vld [vmem:[%s214 + $0x48] sm:$0xf]
      %v250 = vld [vmem:[%s214 + $0x4c] sm:$0xf]
      %v251 = vld [vmem:[%s214 + $0x50] sm:$0xf]
      %v252 = vld [vmem:[%s214 + $0x54] sm:$0xf]
      %v253 = vld [vmem:[%s214 + $0x58] sm:$0xf]
      %v254 = vld [vmem:[%s214 + $0x5c] sm:$0xf]
      %v255 = vld [vmem:[%s214 + $0x60] sm:$0xf]
      %v256 = vld [vmem:[%s214 + $0x64] sm:$0xf]
      %v257 = vld [vmem:[%s214 + $0x68] sm:$0xf]
      %v258 = vld [vmem:[%s214 + $0x6c] sm:$0xf]
      %v259 = vld [vmem:[%s214 + $0x70] sm:$0xf]
      %v260 = vld [vmem:[%s214 + $0x74] sm:$0xf]
      %v261 = vld [vmem:[%s214 + $0x78] sm:$0xf]
      %v262 = vld [vmem:[%s214 + $0x7c] sm:$0xf]
      %v263 = vld [vmem:[%s221] sm:$0xf]
      %v264 = vld [vmem:[%s221 + $0x4] sm:$0xf]
      %v265 = vld [vmem:[%s221 + $0x8] sm:$0xf]
      %v266 = vld [vmem:[%s221 + $0xc] sm:$0xf]
      %v267 = vld [vmem:[%s221 + $0x10] sm:$0xf]
      %v268 = vld [vmem:[%s221 + $0x14] sm:$0xf]
      %v301 = vunpack.c.l.b16 %v231
      %v302 = vunpack.c.l.b16 %v232
      %v303 = vunpack.c.l.b16 %v233
      %v304 = vunpack.c.l.b16 %v234
      %v305 = vunpack.c.l.b16 %v235
      %v306 = vunpack.c.l.b16 %v236
      %v307 = vunpack.c.l.b16 %v237
      %v308 = vunpack.c.l.b16 %v238
      %v309 = vunpack.c.l.b16 %v239
      %v310 = vunpack.c.l.b16 %v240
      %v311 = vunpack.c.l.b16 %v241
      %v312 = vunpack.c.l.b16 %v242
      %v313 = vunpack.c.l.b16 %v243
      %v314 = vunpack.c.l.b16 %v244
      %v315 = vunpack.c.l.b16 %v245
      %v316 = vunpack.c.l.b16 %v246
      %v317 = vunpack.c.l.b16 %v247
      %v318 = vunpack.c.l.b16 %v248
      %v319 = vunpack.c.l.b16 %v249
      %v320 = vunpack.c.l.b16 %v250
      %v321 = vunpack.c.l.b16 %v251
      %v322 = vunpack.c.l.b16 %v252
      %v323 = vunpack.c.l.b16 %v253
      %v324 = vunpack.c.l.b16 %v254
      %v325 = vunpack.c.l.b16 %v255
      %v326 = vunpack.c.l.b16 %v256
      %v327 = vunpack.c.l.b16 %v257
      %v328 = vunpack.c.l.b16 %v258
      %v329 = vunpack.c.l.b16 %v259
      %v330 = vunpack.c.l.b16 %v260
      %v331 = vunpack.c.l.b16 %v261
      %v332 = vunpack.c.l.b16 %v262
      %v333 = vpack.c.b16 %v302, %v301
      %v334 = vpack.c.b16 %v304, %v303
      %v335 = vpack.c.b16 %v306, %v305
      %v336 = vpack.c.b16 %v308, %v307
      %v337 = vpack.c.b16 %v310, %v309
      %v338 = vpack.c.b16 %v312, %v311
      %v339 = vpack.c.b16 %v314, %v313
      %v340 = vpack.c.b16 %v316, %v315
      %v341 = vpack.c.b16 %v318, %v317
      %v342 = vpack.c.b16 %v320, %v319
      %v343 = vpack.c.b16 %v322, %v321
      %v344 = vpack.c.b16 %v324, %v323
      %v345 = vpack.c.b16 %v326, %v325
      %v346 = vpack.c.b16 %v328, %v327
      %v347 = vpack.c.b16 %v330, %v329
      %v348 = vpack.c.b16 %v332, %v331
      %v355 = vunpack.c.l.b16 %v263
      %v356 = vunpack.c.l.b16 %v264
      %v357 = vunpack.c.l.b16 %v265
      %v358 = vunpack.c.l.b16 %v266
      %v359 = vunpack.c.l.b16 %v267
      %v360 = vunpack.c.l.b16 %v268
      %v361 = vpack.c.b16 %v356, %v355
      %v362 = vpack.c.b16 %v358, %v357
      %v363 = vpack.c.b16 %v360, %v359
      %v364 = vld [vmem:[%s2] sm:$0xf]
      %s365 = scalar_lea.vmem %s2, 4
      %v366 = vld [vmem:[%s365] sm:$0xf]
      %vm367 = vsmask.f32 7424
      %v369 = vshrl.u32 %v333, 16
      %v371 = vshll.u32 %v333, 16
      %v373 = vrot.slane %v371, 1
      %v374 = vor.u32 %v369, %v373
      %v376 = vshll.u32 %v334, 16
      %v378 = vrot.slane %v376, 1
      %v379 = vsel %vm367, %v374, %v378
      %v380 = vshrl.u32 %v334, 16
      %v382 = vor.u32 %v380, %v378
      %v384 = vshll.u32 %v335, 16
      %v386 = vrot.slane %v384, 1
      %v387 = vsel %vm367, %v382, %v386
      %v388 = vshrl.u32 %v335, 16
      %v390 = vor.u32 %v388, %v386
      %v392 = vshll.u32 %v336, 16
      %v394 = vrot.slane %v392, 1
      %v395 = vsel %vm367, %v390, %v394
      %v396 = vshrl.u32 %v336, 16
      %v398 = vor.u32 %v396, %v394
      %v400 = vshll.u32 %v337, 16
      %v402 = vrot.slane %v400, 1
      %v403 = vsel %vm367, %v398, %v402
      %v404 = vshrl.u32 %v337, 16
      %v406 = vor.u32 %v404, %v402
      %v408 = vshll.u32 %v338, 16
      %v410 = vrot.slane %v408, 1
      %v411 = vsel %vm367, %v406, %v410
      %v412 = vshrl.u32 %v338, 16
      %v414 = vor.u32 %v412, %v410
      %v416 = vshll.u32 %v339, 16
      %v418 = vrot.slane %v416, 1
      %v419 = vsel %vm367, %v414, %v418
      %v420 = vshrl.u32 %v339, 16
      %v422 = vor.u32 %v420, %v418
      %v424 = vshll.u32 %v340, 16
      %v426 = vrot.slane %v424, 1
      %v427 = vsel %vm367, %v422, %v426
      %v428 = vshrl.u32 %v340, 16
      %v430 = vor.u32 %v428, %v426
      %v432 = vshll.u32 %v341, 16
      %v434 = vrot.slane %v432, 1
      %v435 = vsel %vm367, %v430, %v434
      %v436 = vshrl.u32 %v341, 16
      %v438 = vor.u32 %v436, %v434
      %v440 = vshll.u32 %v342, 16
      %v442 = vrot.slane %v440, 1
      %v443 = vsel %vm367, %v438, %v442
      %v444 = vshrl.u32 %v342, 16
      %v446 = vor.u32 %v444, %v442
      %v448 = vshll.u32 %v343, 16
      %v450 = vrot.slane %v448, 1
      %v451 = vsel %vm367, %v446, %v450
      %v452 = vshrl.u32 %v343, 16
      %v454 = vor.u32 %v452, %v450
      %v456 = vshll.u32 %v344, 16
      %v458 = vrot.slane %v456, 1
      %v459 = vsel %vm367, %v454, %v458
      %v460 = vshrl.u32 %v344, 16
      %v462 = vor.u32 %v460, %v458
      %v464 = vshll.u32 %v345, 16
      %v466 = vrot.slane %v464, 1
      %v467 = vsel %vm367, %v462, %v466
      %v468 = vshrl.u32 %v345, 16
      %v470 = vor.u32 %v468, %v466
      %v472 = vshll.u32 %v346, 16
      %v474 = vrot.slane %v472, 1
      %v475 = vsel %vm367, %v470, %v474
      %v476 = vshrl.u32 %v346, 16
      %v478 = vor.u32 %v476, %v474
      %v480 = vshll.u32 %v347, 16
      %v482 = vrot.slane %v480, 1
      %v483 = vsel %vm367, %v478, %v482
      %v484 = vshrl.u32 %v347, 16
      %v486 = vor.u32 %v484, %v482
      %v488 = vshll.u32 %v348, 16
      %v490 = vrot.slane %v488, 1
      %v491 = vsel %vm367, %v486, %v490
      %v492 = vshrl.u32 %v348, 16
      %v494 = vor.u32 %v492, %v490
      %v496 = vshll.u32 %v361, 16
      %v498 = vrot.slane %v496, 1
      %v499 = vsel %vm367, %v494, %v498
      %vm500 = vcmask 64512
      %v502 = vsel %vm500, %v379, 0
      %v505 = vsel %vm500, %v387, 0
      %v508 = vsel %vm500, %v395, 0
      %v511 = vsel %vm500, %v403, 0
      %v514 = vsel %vm500, %v411, 0
      %v517 = vsel %vm500, %v419, 0
      %v520 = vsel %vm500, %v427, 0
      %v523 = vsel %vm500, %v435, 0
      %v526 = vsel %vm500, %v443, 0
      %v529 = vsel %vm500, %v451, 0
      %v532 = vsel %vm500, %v459, 0
      %v535 = vsel %vm500, %v467, 0
      %v538 = vsel %vm500, %v475, 0
      %v541 = vsel %vm500, %v483, 0
      %v544 = vsel %vm500, %v491, 0
      %v547 = vsel %vm500, %v499, 0
      %vm549 = vcmask 1043456
      %v551 = vsel %vm549, %v366, 0
      %553 = vmatprep.subr.bf16.mxu0 0
      %554 = vmatpush1.bf16.msra.mxu0 0
      %555 = vmatprep.subr.bf16.mxu0 0
      %556 = vmatpush1.bf16.msra.mxu0 0
      %557 = vmatprep.subr.bf16.mxu0 0
      %558 = vmatpush1.bf16.msra.mxu0 0
      %559 = vmatprep.subr.bf16.mxu0 0
      %560 = vmatpush1.bf16.msra.mxu0 0
      %561 = vmatprep.subr.bf16.mxu0 0
      %562 = vmatpush1.bf16.msra.mxu0 0
      %563 = vmatprep.subr.bf16.mxu0 0
      %564 = vmatpush1.bf16.msra.mxu0 0
      %565 = vmatprep.subr.bf16.mxu0 0
      %566 = vmatpush1.bf16.msra.mxu0 0
      %567 = vmatprep.subr.bf16.mxu0 0
      %568 = vmatpush1.bf16.msra.mxu0 %v551
      %569 = vmatprep.subr.bf16.mxu0 0
      %570 = vmatpush2.bf16.msra.mxu0 0
      %571 = vmatprep.subr.bf16.mxu0 0
      %572 = vmatpush2.bf16.msra.mxu0 0
      %573 = vmatprep.subr.bf16.mxu0 0
      %574 = vmatpush2.bf16.msra.mxu0 0
      %575 = vmatprep.subr.bf16.mxu0 0
      %576 = vmatpush2.bf16.msra.mxu0 0
      %577 = vmatprep.subr.bf16.mxu0 0
      %578 = vmatpush2.bf16.msra.mxu0 0
      %579 = vmatprep.subr.bf16.mxu0 0
      %580 = vmatpush2.bf16.msra.mxu0 0
      %581 = vmatprep.subr.bf16.mxu0 0
      %582 = vmatpush2.bf16.msra.mxu0 0
      %583 = vmatprep.subr.bf16.mxu0 0
      %584 = vmatpush2.bf16.msra.mxu0 0
      %585 = vmatprep.mubr.bf16.mxu0 0
      %586 = vmatmul.mubr.bf16.gmra.mxu0 %v502
      %v587 = vpop.f32.mrf.mxu0
      %v588 = vadd.f32 0.0, %v587
      %v589 = vpop.f32.mrf.mxu0
      %v590 = vpop.f32.mrf.mxu0
      %v591 = vadd.f32 0.0, %v590
      %v592 = vpop.f32.mrf.mxu0
      %593 = vmatprep.mubr.bf16.mxu0 0
      %594 = vmatmul.mubr.bf16.gmra.mxu0 %v505
      %v595 = vpop.f32.mrf.mxu0
      %v596 = vadd.f32 0.0, %v595
      %v597 = vpop.f32.mrf.mxu0
      %v598 = vpop.f32.mrf.mxu0
      %v599 = vadd.f32 0.0, %v598
      %v600 = vpop.f32.mrf.mxu0
      %601 = vmatprep.mubr.bf16.mxu0 0
      %602 = vmatmul.mubr.bf16.gmra.mxu0 %v508
      %v603 = vpop.f32.mrf.mxu0
      %v604 = vadd.f32 0.0, %v603
      %v605 = vpop.f32.mrf.mxu0
      %v606 = vpop.f32.mrf.mxu0
      %v607 = vadd.f32 0.0, %v606
      %v608 = vpop.f32.mrf.mxu0
      %609 = vmatprep.mubr.bf16.mxu0 0
      %610 = vmatmul.mubr.bf16.gmra.mxu0 %v511
      %v611 = vpop.f32.mrf.mxu0
      %v612 = vadd.f32 0.0, %v611
      %v613 = vpop.f32.mrf.mxu0
      %v614 = vpop.f32.mrf.mxu0
      %v615 = vadd.f32 0.0, %v614
      %v616 = vpop.f32.mrf.mxu0
      %617 = vmatprep.mubr.bf16.mxu0 0
      %618 = vmatmul.mubr.bf16.gmra.mxu0 %v514
      %v619 = vpop.f32.mrf.mxu0
      %v620 = vadd.f32 0.0, %v619
      %v621 = vpop.f32.mrf.mxu0
      %v622 = vpop.f32.mrf.mxu0
      %v623 = vadd.f32 0.0, %v622
      %v624 = vpop.f32.mrf.mxu0
      %625 = vmatprep.mubr.bf16.mxu0 0
      %626 = vmatmul.mubr.bf16.gmra.mxu0 %v517
      %v627 = vpop.f32.mrf.mxu0
      %v628 = vadd.f32 0.0, %v627
      %v629 = vpop.f32.mrf.mxu0
      %v630 = vpop.f32.mrf.mxu0
      %v631 = vadd.f32 0.0, %v630
      %v632 = vpop.f32.mrf.mxu0
      %633 = vmatprep.mubr.bf16.mxu0 0
      %634 = vmatmul.mubr.bf16.gmra.mxu0 %v520
      %v635 = vpop.f32.mrf.mxu0
      %v636 = vadd.f32 0.0, %v635
      %v637 = vpop.f32.mrf.mxu0
      %v638 = vpop.f32.mrf.mxu0
      %v639 = vadd.f32 0.0, %v638
      %v640 = vpop.f32.mrf.mxu0
      %641 = vmatprep.mubr.bf16.mxu0 0
      %642 = vmatmul.mubr.bf16.gmra.mxu0 %v523
      %v643 = vpop.f32.mrf.mxu0
      %v644 = vadd.f32 0.0, %v643
      %v645 = vpop.f32.mrf.mxu0
      %v646 = vpop.f32.mrf.mxu0
      %v647 = vadd.f32 0.0, %v646
      %v648 = vpop.f32.mrf.mxu0
      %649 = vmatprep.mubr.bf16.mxu0 0
      %650 = vmatmul.mubr.bf16.gmra.mxu0 %v526
      %v651 = vpop.f32.mrf.mxu0
      %v652 = vadd.f32 0.0, %v651
      %v653 = vpop.f32.mrf.mxu0
      %v654 = vpop.f32.mrf.mxu0
      %v655 = vadd.f32 0.0, %v654
      %v656 = vpop.f32.mrf.mxu0
      %657 = vmatprep.mubr.bf16.mxu0 0
      %658 = vmatmul.mubr.bf16.gmra.mxu0 %v529
      %v659 = vpop.f32.mrf.mxu0
      %v660 = vadd.f32 0.0, %v659
      %v661 = vpop.f32.mrf.mxu0
      %v662 = vpop.f32.mrf.mxu0
      %v663 = vadd.f32 0.0, %v662
      %v664 = vpop.f32.mrf.mxu0
      %665 = vmatprep.mubr.bf16.mxu0 0
      %666 = vmatmul.mubr.bf16.gmra.mxu0 %v532
      %v667 = vpop.f32.mrf.mxu0
      %v668 = vadd.f32 0.0, %v667
      %v669 = vpop.f32.mrf.mxu0
      %v670 = vpop.f32.mrf.mxu0
      %v671 = vadd.f32 0.0, %v670
      %v672 = vpop.f32.mrf.mxu0
      %673 = vmatprep.mubr.bf16.mxu0 0
      %674 = vmatmul.mubr.bf16.gmra.mxu0 %v535
      %v675 = vpop.f32.mrf.mxu0
      %v676 = vadd.f32 0.0, %v675
      %v677 = vpop.f32.mrf.mxu0
      %v678 = vpop.f32.mrf.mxu0
      %v679 = vadd.f32 0.0, %v678
      %v680 = vpop.f32.mrf.mxu0
      %681 = vmatprep.mubr.bf16.mxu0 0
      %682 = vmatmul.mubr.bf16.gmra.mxu0 %v538
      %v683 = vpop.f32.mrf.mxu0
      %v684 = vadd.f32 0.0, %v683
      %v685 = vpop.f32.mrf.mxu0
      %v686 = vpop.f32.mrf.mxu0
      %v687 = vadd.f32 0.0, %v686
      %v688 = vpop.f32.mrf.mxu0
      %689 = vmatprep.mubr.bf16.mxu0 0
      %690 = vmatmul.mubr.bf16.gmra.mxu0 %v541
      %v691 = vpop.f32.mrf.mxu0
      %v692 = vadd.f32 0.0, %v691
      %v693 = vpop.f32.mrf.mxu0
      %v694 = vpop.f32.mrf.mxu0
      %v695 = vadd.f32 0.0, %v694
      %v696 = vpop.f32.mrf.mxu0
      %697 = vmatprep.mubr.bf16.mxu0 0
      %698 = vmatmul.mubr.bf16.gmra.mxu0 %v544
      %v699 = vpop.f32.mrf.mxu0
      %v700 = vadd.f32 0.0, %v699
      %v701 = vpop.f32.mrf.mxu0
      %v702 = vpop.f32.mrf.mxu0
      %v703 = vadd.f32 0.0, %v702
      %v704 = vpop.f32.mrf.mxu0
      %705 = vmatprep.mubr.bf16.mxu0 0
      %706 = vmatmul.mubr.bf16.gmra.mxu0 %v547
      %v707 = vpop.f32.mrf.mxu0
      %v708 = vadd.f32 0.0, %v707
      %v709 = vpop.f32.mrf.mxu0
      %v710 = vpop.f32.mrf.mxu0
      %v711 = vadd.f32 0.0, %v710
      %v712 = vpop.f32.mrf.mxu0
      %713 = vdwg.mxu0
      %v714 = vsel %vm500, %v333, 0
      %v716 = vsel %vm500, %v334, 0
      %v718 = vsel %vm500, %v335, 0
      %v720 = vsel %vm500, %v336, 0
      %v722 = vsel %vm500, %v337, 0
      %v724 = vsel %vm500, %v338, 0
      %v726 = vsel %vm500, %v339, 0
      %v728 = vsel %vm500, %v340, 0
      %v730 = vsel %vm500, %v341, 0
      %v732 = vsel %vm500, %v342, 0
      %v734 = vsel %vm500, %v343, 0
      %v736 = vsel %vm500, %v344, 0
      %v738 = vsel %vm500, %v345, 0
      %v740 = vsel %vm500, %v346, 0
      %v742 = vsel %vm500, %v347, 0
      %v744 = vsel %vm500, %v348, 0
      %v747 = vsel %vm549, %v364, 0
      %749 = vmatprep.subr.bf16.mxu0 0
      %750 = vmatpush1.bf16.msra.mxu0 0
      %751 = vmatprep.subr.bf16.mxu0 0
      %752 = vmatpush1.bf16.msra.mxu0 0
      %753 = vmatprep.subr.bf16.mxu0 0
      %754 = vmatpush1.bf16.msra.mxu0 0
      %755 = vmatprep.subr.bf16.mxu0 0
      %756 = vmatpush1.bf16.msra.mxu0 0
      %757 = vmatprep.subr.bf16.mxu0 0
      %758 = vmatpush1.bf16.msra.mxu0 0
      %759 = vmatprep.subr.bf16.mxu0 0
      %760 = vmatpush1.bf16.msra.mxu0 0
      %761 = vmatprep.subr.bf16.mxu0 0
      %762 = vmatpush1.bf16.msra.mxu0 0
      %763 = vmatprep.subr.bf16.mxu0 0
      %764 = vmatpush1.bf16.msra.mxu0 %v747
      %765 = vmatprep.subr.bf16.mxu0 0
      %766 = vmatpush2.bf16.msra.mxu0 0
      %767 = vmatprep.subr.bf16.mxu0 0
      %768 = vmatpush2.bf16.msra.mxu0 0
      %769 = vmatprep.subr.bf16.mxu0 0
      %770 = vmatpush2.bf16.msra.mxu0 0
      %771 = vmatprep.subr.bf16.mxu0 0
      %772 = vmatpush2.bf16.msra.mxu0 0
      %773 = vmatprep.subr.bf16.mxu0 0
      %774 = vmatpush2.bf16.msra.mxu0 0
      %775 = vmatprep.subr.bf16.mxu0 0
      %776 = vmatpush2.bf16.msra.mxu0 0
      %777 = vmatprep.subr.bf16.mxu0 0
      %778 = vmatpush2.bf16.msra.mxu0 0
      %779 = vmatprep.subr.bf16.mxu0 0
      %780 = vmatpush2.bf16.msra.mxu0 0
      %781 = vmatprep.mubr.bf16.mxu0 0
      %782 = vmatmul.mubr.bf16.gmra.mxu0 %v714
      %v783 = vpop.f32.mrf.mxu0
      %v784 = vadd.f32 %v588, %v783
      %v785 = vpop.f32.mrf.mxu0
      %v786 = vpop.f32.mrf.mxu0
      %v787 = vadd.f32 %v591, %v786
      %v788 = vpop.f32.mrf.mxu0
      %789 = vmatprep.mubr.bf16.mxu0 0
      %790 = vmatmul.mubr.bf16.gmra.mxu0 %v716
      %v791 = vpop.f32.mrf.mxu0
      %v792 = vadd.f32 %v596, %v791
      %v793 = vpop.f32.mrf.mxu0
      %v794 = vpop.f32.mrf.mxu0
      %v795 = vadd.f32 %v599, %v794
      %v796 = vpop.f32.mrf.mxu0
      %797 = vmatprep.mubr.bf16.mxu0 0
      %798 = vmatmul.mubr.bf16.gmra.mxu0 %v718
      %v799 = vpop.f32.mrf.mxu0
      %v800 = vadd.f32 %v604, %v799
      %v801 = vpop.f32.mrf.mxu0
      %v802 = vpop.f32.mrf.mxu0
      %v803 = vadd.f32 %v607, %v802
      %v804 = vpop.f32.mrf.mxu0
      %805 = vmatprep.mubr.bf16.mxu0 0
      %806 = vmatmul.mubr.bf16.gmra.mxu0 %v720
      %v807 = vpop.f32.mrf.mxu0
      %v808 = vadd.f32 %v612, %v807
      %v809 = vpop.f32.mrf.mxu0
      %v810 = vpop.f32.mrf.mxu0
      %v811 = vadd.f32 %v615, %v810
      %v812 = vpop.f32.mrf.mxu0
      %813 = vmatprep.mubr.bf16.mxu0 0
      %814 = vmatmul.mubr.bf16.gmra.mxu0 %v722
      %v815 = vpop.f32.mrf.mxu0
      %v816 = vadd.f32 %v620, %v815
      %v817 = vpop.f32.mrf.mxu0
      %v818 = vpop.f32.mrf.mxu0
      %v819 = vadd.f32 %v623, %v818
      %v820 = vpop.f32.mrf.mxu0
      %821 = vmatprep.mubr.bf16.mxu0 0
      %822 = vmatmul.mubr.bf16.gmra.mxu0 %v724
      %v823 = vpop.f32.mrf.mxu0
      %v824 = vadd.f32 %v628, %v823
      %v825 = vpop.f32.mrf.mxu0
      %v826 = vpop.f32.mrf.mxu0
      %v827 = vadd.f32 %v631, %v826
      %v828 = vpop.f32.mrf.mxu0
      %829 = vmatprep.mubr.bf16.mxu0 0
      %830 = vmatmul.mubr.bf16.gmra.mxu0 %v726
      %v831 = vpop.f32.mrf.mxu0
      %v832 = vadd.f32 %v636, %v831
      %v833 = vpop.f32.mrf.mxu0
      %v834 = vpop.f32.mrf.mxu0
      %v835 = vadd.f32 %v639, %v834
      %v836 = vpop.f32.mrf.mxu0
      %837 = vmatprep.mubr.bf16.mxu0 0
      %838 = vmatmul.mubr.bf16.gmra.mxu0 %v728
      %v839 = vpop.f32.mrf.mxu0
      %v840 = vadd.f32 %v644, %v839
      %v841 = vpop.f32.mrf.mxu0
      %v842 = vpop.f32.mrf.mxu0
      %v843 = vadd.f32 %v647, %v842
      %v844 = vpop.f32.mrf.mxu0
      %845 = vmatprep.mubr.bf16.mxu0 0
      %846 = vmatmul.mubr.bf16.gmra.mxu0 %v730
      %v847 = vpop.f32.mrf.mxu0
      %v848 = vadd.f32 %v652, %v847
      %v849 = vpop.f32.mrf.mxu0
      %v850 = vpop.f32.mrf.mxu0
      %v851 = vadd.f32 %v655, %v850
      %v852 = vpop.f32.mrf.mxu0
      %853 = vmatprep.mubr.bf16.mxu0 0
      %854 = vmatmul.mubr.bf16.gmra.mxu0 %v732
      %v855 = vpop.f32.mrf.mxu0
      %v856 = vadd.f32 %v660, %v855
      %v857 = vpop.f32.mrf.mxu0
      %v858 = vpop.f32.mrf.mxu0
      %v859 = vadd.f32 %v663, %v858
      %v860 = vpop.f32.mrf.mxu0
      %861 = vmatprep.mubr.bf16.mxu0 0
      %862 = vmatmul.mubr.bf16.gmra.mxu0 %v734
      %v863 = vpop.f32.mrf.mxu0
      %v864 = vadd.f32 %v668, %v863
      %v865 = vpop.f32.mrf.mxu0
      %v866 = vpop.f32.mrf.mxu0
      %v867 = vadd.f32 %v671, %v866
      %v868 = vpop.f32.mrf.mxu0
      %869 = vmatprep.mubr.bf16.mxu0 0
      %870 = vmatmul.mubr.bf16.gmra.mxu0 %v736
      %v871 = vpop.f32.mrf.mxu0
      %v872 = vadd.f32 %v676, %v871
      %v873 = vpop.f32.mrf.mxu0
      %v874 = vpop.f32.mrf.mxu0
      %v875 = vadd.f32 %v679, %v874
      %v876 = vpop.f32.mrf.mxu0
      %877 = vmatprep.mubr.bf16.mxu0 0
      %878 = vmatmul.mubr.bf16.gmra.mxu0 %v738
      %v879 = vpop.f32.mrf.mxu0
      %v880 = vadd.f32 %v684, %v879
      %v881 = vpop.f32.mrf.mxu0
      %v882 = vpop.f32.mrf.mxu0
      %v883 = vadd.f32 %v687, %v882
      %v884 = vpop.f32.mrf.mxu0
      %885 = vmatprep.mubr.bf16.mxu0 0
      %886 = vmatmul.mubr.bf16.gmra.mxu0 %v740
      %v887 = vpop.f32.mrf.mxu0
      %v888 = vadd.f32 %v692, %v887
      %v889 = vpop.f32.mrf.mxu0
      %v890 = vpop.f32.mrf.mxu0
      %v891 = vadd.f32 %v695, %v890
      %v892 = vpop.f32.mrf.mxu0
      %893 = vmatprep.mubr.bf16.mxu0 0
      %894 = vmatmul.mubr.bf16.gmra.mxu0 %v742
      %v895 = vpop.f32.mrf.mxu0
      %v896 = vadd.f32 %v700, %v895
      %v897 = vpop.f32.mrf.mxu0
      %v898 = vpop.f32.mrf.mxu0
      %v899 = vadd.f32 %v703, %v898
      %v900 = vpop.f32.mrf.mxu0
      %901 = vmatprep.mubr.bf16.mxu0 0
      %902 = vmatmul.mubr.bf16.gmra.mxu0 %v744
      %v903 = vpop.f32.mrf.mxu0
      %v904 = vadd.f32 %v708, %v903
      %v905 = vpop.f32.mrf.mxu0
      %v906 = vpop.f32.mrf.mxu0
      %v907 = vadd.f32 %v711, %v906
      %v908 = vpop.f32.mrf.mxu0
      %909 = vdwg.mxu0
      %s910 = scalar_lea.vmem %s2, 8
      %v911 = vld [vmem:[%s910] sm:$0xf]
      %vm912 = vcmask 1046528
      %v913 = vrot.slane %v333, 1
      %v914 = vrot.slane %v334, 1
      %v915 = vsel %vm912, %v913, %v914
      %v916 = vrot.slane %v335, 1
      %v917 = vsel %vm912, %v914, %v916
      %v918 = vrot.slane %v336, 1
      %v919 = vsel %vm912, %v916, %v918
      %v920 = vrot.slane %v337, 1
      %v921 = vsel %vm912, %v918, %v920
      %v922 = vrot.slane %v338, 1
      %v923 = vsel %vm912, %v920, %v922
      %v924 = vrot.slane %v339, 1
      %v925 = vsel %vm912, %v922, %v924
      %v926 = vrot.slane %v340, 1
      %v927 = vsel %vm912, %v924, %v926
      %v928 = vrot.slane %v341, 1
      %v929 = vsel %vm912, %v926, %v928
      %v930 = vrot.slane %v342, 1
      %v931 = vsel %vm912, %v928, %v930
      %v932 = vrot.slane %v343, 1
      %v933 = vsel %vm912, %v930, %v932
      %v934 = vrot.slane %v344, 1
      %v935 = vsel %vm912, %v932, %v934
      %v936 = vrot.slane %v345, 1
      %v937 = vsel %vm912, %v934, %v936
      %v938 = vrot.slane %v346, 1
      %v939 = vsel %vm912, %v936, %v938
      %v940 = vrot.slane %v347, 1
      %v941 = vsel %vm912, %v938, %v940
      %v942 = vrot.slane %v348, 1
      %v943 = vsel %vm912, %v940, %v942
      %v944 = vrot.slane %v361, 1
      %v945 = vsel %vm912, %v942, %v944
      %v947 = vsel %vm500, %v915, 0
      %v950 = vsel %vm500, %v917, 0
      %v953 = vsel %vm500, %v919, 0
      %v956 = vsel %vm500, %v921, 0
      %v959 = vsel %vm500, %v923, 0
      %v962 = vsel %vm500, %v925, 0
      %v965 = vsel %vm500, %v927, 0
      %v968 = vsel %vm500, %v929, 0
      %v971 = vsel %vm500, %v931, 0
      %v974 = vsel %vm500, %v933, 0
      %v977 = vsel %vm500, %v935, 0
      %v980 = vsel %vm500, %v937, 0
      %v983 = vsel %vm500, %v939, 0
      %v986 = vsel %vm500, %v941, 0
      %v989 = vsel %vm500, %v943, 0
      %v992 = vsel %vm500, %v945, 0
      %v995 = vsel %vm549, %v911, 0
      %997 = vmatprep.subr.bf16.mxu0 0
      %998 = vmatpush1.bf16.msra.mxu0 0
      %999 = vmatprep.subr.bf16.mxu0 0
      %1000 = vmatpush1.bf16.msra.mxu0 0
      %1001 = vmatprep.subr.bf16.mxu0 0
      %1002 = vmatpush1.bf16.msra.mxu0 0
      %1003 = vmatprep.subr.bf16.mxu0 0
      %1004 = vmatpush1.bf16.msra.mxu0 0
      %1005 = vmatprep.subr.bf16.mxu0 0
      %1006 = vmatpush1.bf16.msra.mxu0 0
      %1007 = vmatprep.subr.bf16.mxu0 0
      %1008 = vmatpush1.bf16.msra.mxu0 0
      %1009 = vmatprep.subr.bf16.mxu0 0
      %1010 = vmatpush1.bf16.msra.mxu0 0
      %1011 = vmatprep.subr.bf16.mxu0 0
      %1012 = vmatpush1.bf16.msra.mxu0 %v995
      %1013 = vmatprep.subr.bf16.mxu0 0
      %1014 = vmatpush2.bf16.msra.mxu0 0
      %1015 = vmatprep.subr.bf16.mxu0 0
      %1016 = vmatpush2.bf16.msra.mxu0 0
      %1017 = vmatprep.subr.bf16.mxu0 0
      %1018 = vmatpush2.bf16.msra.mxu0 0
      %1019 = vmatprep.subr.bf16.mxu0 0
      %1020 = vmatpush2.bf16.msra.mxu0 0
      %1021 = vmatprep.subr.bf16.mxu0 0
      %1022 = vmatpush2.bf16.msra.mxu0 0
      %1023 = vmatprep.subr.bf16.mxu0 0
      %1024 = vmatpush2.bf16.msra.mxu0 0
      %1025 = vmatprep.subr.bf16.mxu0 0
      %1026 = vmatpush2.bf16.msra.mxu0 0
      %1027 = vmatprep.subr.bf16.mxu0 0
      %1028 = vmatpush2.bf16.msra.mxu0 0
      %1029 = vmatprep.mubr.bf16.mxu0 0
      %1030 = vmatmul.mubr.bf16.gmra.mxu0 %v947
      %v1031 = vpop.f32.mrf.mxu0
      %v1032 = vadd.f32 0.0, %v1031
      %v1033 = vpop.f32.mrf.mxu0
      %v1034 = vpop.f32.mrf.mxu0
      %v1035 = vadd.f32 0.0, %v1034
      %v1036 = vpop.f32.mrf.mxu0
      %1037 = vmatprep.mubr.bf16.mxu0 0
      %1038 = vmatmul.mubr.bf16.gmra.mxu0 %v950
      %v1039 = vpop.f32.mrf.mxu0
      %v1040 = vadd.f32 0.0, %v1039
      %v1041 = vpop.f32.mrf.mxu0
      %v1042 = vpop.f32.mrf.mxu0
      %v1043 = vadd.f32 0.0, %v1042
      %v1044 = vpop.f32.mrf.mxu0
      %1045 = vmatprep.mubr.bf16.mxu0 0
      %1046 = vmatmul.mubr.bf16.gmra.mxu0 %v953
      %v1047 = vpop.f32.mrf.mxu0
      %v1048 = vadd.f32 0.0, %v1047
      %v1049 = vpop.f32.mrf.mxu0
      %v1050 = vpop.f32.mrf.mxu0
      %v1051 = vadd.f32 0.0, %v1050
      %v1052 = vpop.f32.mrf.mxu0
      %1053 = vmatprep.mubr.bf16.mxu0 0
      %1054 = vmatmul.mubr.bf16.gmra.mxu0 %v956
      %v1055 = vpop.f32.mrf.mxu0
      %v1056 = vadd.f32 0.0, %v1055
      %v1057 = vpop.f32.mrf.mxu0
      %v1058 = vpop.f32.mrf.mxu0
      %v1059 = vadd.f32 0.0, %v1058
      %v1060 = vpop.f32.mrf.mxu0
      %1061 = vmatprep.mubr.bf16.mxu0 0
      %1062 = vmatmul.mubr.bf16.gmra.mxu0 %v959
      %v1063 = vpop.f32.mrf.mxu0
      %v1064 = vadd.f32 0.0, %v1063
      %v1065 = vpop.f32.mrf.mxu0
      %v1066 = vpop.f32.mrf.mxu0
      %v1067 = vadd.f32 0.0, %v1066
      %v1068 = vpop.f32.mrf.mxu0
      %1069 = vmatprep.mubr.bf16.mxu0 0
      %1070 = vmatmul.mubr.bf16.gmra.mxu0 %v962
      %v1071 = vpop.f32.mrf.mxu0
      %v1072 = vadd.f32 0.0, %v1071
      %v1073 = vpop.f32.mrf.mxu0
      %v1074 = vpop.f32.mrf.mxu0
      %v1075 = vadd.f32 0.0, %v1074
      %v1076 = vpop.f32.mrf.mxu0
      %1077 = vmatprep.mubr.bf16.mxu0 0
      %1078 = vmatmul.mubr.bf16.gmra.mxu0 %v965
      %v1079 = vpop.f32.mrf.mxu0
      %v1080 = vadd.f32 0.0, %v1079
      %v1081 = vpop.f32.mrf.mxu0
      %v1082 = vpop.f32.mrf.mxu0
      %v1083 = vadd.f32 0.0, %v1082
      %v1084 = vpop.f32.mrf.mxu0
      %1085 = vmatprep.mubr.bf16.mxu0 0
      %1086 = vmatmul.mubr.bf16.gmra.mxu0 %v968
      %v1087 = vpop.f32.mrf.mxu0
      %v1088 = vadd.f32 0.0, %v1087
      %v1089 = vpop.f32.mrf.mxu0
      %v1090 = vpop.f32.mrf.mxu0
      %v1091 = vadd.f32 0.0, %v1090
      %v1092 = vpop.f32.mrf.mxu0
      %1093 = vmatprep.mubr.bf16.mxu0 0
      %1094 = vmatmul.mubr.bf16.gmra.mxu0 %v971
      %v1095 = vpop.f32.mrf.mxu0
      %v1096 = vadd.f32 0.0, %v1095
      %v1097 = vpop.f32.mrf.mxu0
      %v1098 = vpop.f32.mrf.mxu0
      %v1099 = vadd.f32 0.0, %v1098
      %v1100 = vpop.f32.mrf.mxu0
      %1101 = vmatprep.mubr.bf16.mxu0 0
      %1102 = vmatmul.mubr.bf16.gmra.mxu0 %v974
      %v1103 = vpop.f32.mrf.mxu0
      %v1104 = vadd.f32 0.0, %v1103
      %v1105 = vpop.f32.mrf.mxu0
      %v1106 = vpop.f32.mrf.mxu0
      %v1107 = vadd.f32 0.0, %v1106
      %v1108 = vpop.f32.mrf.mxu0
      %1109 = vmatprep.mubr.bf16.mxu0 0
      %1110 = vmatmul.mubr.bf16.gmra.mxu0 %v977
      %v1111 = vpop.f32.mrf.mxu0
      %v1112 = vadd.f32 0.0, %v1111
      %v1113 = vpop.f32.mrf.mxu0
      %v1114 = vpop.f32.mrf.mxu0
      %v1115 = vadd.f32 0.0, %v1114
      %v1116 = vpop.f32.mrf.mxu0
      %1117 = vmatprep.mubr.bf16.mxu0 0
      %1118 = vmatmul.mubr.bf16.gmra.mxu0 %v980
      %v1119 = vpop.f32.mrf.mxu0
      %v1120 = vadd.f32 0.0, %v1119
      %v1121 = vpop.f32.mrf.mxu0
      %v1122 = vpop.f32.mrf.mxu0
      %v1123 = vadd.f32 0.0, %v1122
      %v1124 = vpop.f32.mrf.mxu0
      %1125 = vmatprep.mubr.bf16.mxu0 0
      %1126 = vmatmul.mubr.bf16.gmra.mxu0 %v983
      %v1127 = vpop.f32.mrf.mxu0
      %v1128 = vadd.f32 0.0, %v1127
      %v1129 = vpop.f32.mrf.mxu0
      %v1130 = vpop.f32.mrf.mxu0
      %v1131 = vadd.f32 0.0, %v1130
      %v1132 = vpop.f32.mrf.mxu0
      %1133 = vmatprep.mubr.bf16.mxu0 0
      %1134 = vmatmul.mubr.bf16.gmra.mxu0 %v986
      %v1135 = vpop.f32.mrf.mxu0
      %v1136 = vadd.f32 0.0, %v1135
      %v1137 = vpop.f32.mrf.mxu0
      %v1138 = vpop.f32.mrf.mxu0
      %v1139 = vadd.f32 0.0, %v1138
      %v1140 = vpop.f32.mrf.mxu0
      %1141 = vmatprep.mubr.bf16.mxu0 0
      %1142 = vmatmul.mubr.bf16.gmra.mxu0 %v989
      %v1143 = vpop.f32.mrf.mxu0
      %v1144 = vadd.f32 0.0, %v1143
      %v1145 = vpop.f32.mrf.mxu0
      %v1146 = vpop.f32.mrf.mxu0
      %v1147 = vadd.f32 0.0, %v1146
      %v1148 = vpop.f32.mrf.mxu0
      %1149 = vmatprep.mubr.bf16.mxu0 0
      %1150 = vmatmul.mubr.bf16.gmra.mxu0 %v992
      %v1151 = vpop.f32.mrf.mxu0
      %v1152 = vadd.f32 0.0, %v1151
      %v1153 = vpop.f32.mrf.mxu0
      %v1154 = vpop.f32.mrf.mxu0
      %v1155 = vadd.f32 0.0, %v1154
      %v1156 = vpop.f32.mrf.mxu0
      %1157 = vdwg.mxu0
      %v1158 = vadd.f32 %v784, %v1032
      %v1159 = vadd.f32 %v787, %v1035
      %v1160 = vadd.f32 %v792, %v1040
      %v1161 = vadd.f32 %v795, %v1043
      %v1162 = vadd.f32 %v800, %v1048
      %v1163 = vadd.f32 %v803, %v1051
      %v1164 = vadd.f32 %v808, %v1056
      %v1165 = vadd.f32 %v811, %v1059
      %v1166 = vadd.f32 %v816, %v1064
      %v1167 = vadd.f32 %v819, %v1067
      %v1168 = vadd.f32 %v824, %v1072
      %v1169 = vadd.f32 %v827, %v1075
      %v1170 = vadd.f32 %v832, %v1080
      %v1171 = vadd.f32 %v835, %v1083
      %v1172 = vadd.f32 %v840, %v1088
      %v1173 = vadd.f32 %v843, %v1091
      %v1174 = vadd.f32 %v848, %v1096
      %v1175 = vadd.f32 %v851, %v1099
      %v1176 = vadd.f32 %v856, %v1104
      %v1177 = vadd.f32 %v859, %v1107
      %v1178 = vadd.f32 %v864, %v1112
      %v1179 = vadd.f32 %v867, %v1115
      %v1180 = vadd.f32 %v872, %v1120
      %v1181 = vadd.f32 %v875, %v1123
      %v1182 = vadd.f32 %v880, %v1128
      %v1183 = vadd.f32 %v883, %v1131
      %v1184 = vadd.f32 %v888, %v1136
      %v1185 = vadd.f32 %v891, %v1139
      %v1186 = vadd.f32 %v896, %v1144
      %v1187 = vadd.f32 %v899, %v1147
      %v1188 = vadd.f32 %v904, %v1152
      %v1189 = vadd.f32 %v907, %v1155
      %s1190 = scalar_lea.vmem %s2, 12
      %v1191 = vld [vmem:[%s1190] sm:$0xf]
      %v1192 = vrot.slane %v362, 1
      %v1193 = vsel %vm912, %v944, %v1192
      %v1195 = vsel %vm500, %v1193, 0
      %v1198 = vsel %vm549, %v1191, 0
      %1200 = vmatprep.subr.bf16.mxu0 0
      %1201 = vmatpush1.bf16.msra.mxu0 0
      %1202 = vmatprep.subr.bf16.mxu0 0
      %1203 = vmatpush1.bf16.msra.mxu0 0
      %1204 = vmatprep.subr.bf16.mxu0 0
      %1205 = vmatpush1.bf16.msra.mxu0 0
      %1206 = vmatprep.subr.bf16.mxu0 0
      %1207 = vmatpush1.bf16.msra.mxu0 0
      %1208 = vmatprep.subr.bf16.mxu0 0
      %1209 = vmatpush1.bf16.msra.mxu0 0
      %1210 = vmatprep.subr.bf16.mxu0 0
      %1211 = vmatpush1.bf16.msra.mxu0 0
      %1212 = vmatprep.subr.bf16.mxu0 0
      %1213 = vmatpush1.bf16.msra.mxu0 0
      %1214 = vmatprep.subr.bf16.mxu0 0
      %1215 = vmatpush1.bf16.msra.mxu0 %v1198
      %1216 = vmatprep.subr.bf16.mxu0 0
      %1217 = vmatpush2.bf16.msra.mxu0 0
      %1218 = vmatprep.subr.bf16.mxu0 0
      %1219 = vmatpush2.bf16.msra.mxu0 0
      %1220 = vmatprep.subr.bf16.mxu0 0
      %1221 = vmatpush2.bf16.msra.mxu0 0
      %1222 = vmatprep.subr.bf16.mxu0 0
      %1223 = vmatpush2.bf16.msra.mxu0 0
      %1224 = vmatprep.subr.bf16.mxu0 0
      %1225 = vmatpush2.bf16.msra.mxu0 0
      %1226 = vmatprep.subr.bf16.mxu0 0
      %1227 = vmatpush2.bf16.msra.mxu0 0
      %1228 = vmatprep.subr.bf16.mxu0 0
      %1229 = vmatpush2.bf16.msra.mxu0 0
      %1230 = vmatprep.subr.bf16.mxu0 0
      %1231 = vmatpush2.bf16.msra.mxu0 0
      %1232 = vmatprep.mubr.bf16.mxu0 0
      %1233 = vmatmul.mubr.bf16.gmra.mxu0 %v950
      %v1234 = vpop.f32.mrf.mxu0
      %v1235 = vadd.f32 0.0, %v1234
      %v1236 = vpop.f32.mrf.mxu0
      %v1237 = vpop.f32.mrf.mxu0
      %v1238 = vadd.f32 0.0, %v1237
      %v1239 = vpop.f32.mrf.mxu0
      %1240 = vmatprep.mubr.bf16.mxu0 0
      %1241 = vmatmul.mubr.bf16.gmra.mxu0 %v953
      %v1242 = vpop.f32.mrf.mxu0
      %v1243 = vadd.f32 0.0, %v1242
      %v1244 = vpop.f32.mrf.mxu0
      %v1245 = vpop.f32.mrf.mxu0
      %v1246 = vadd.f32 0.0, %v1245
      %v1247 = vpop.f32.mrf.mxu0
      %1248 = vmatprep.mubr.bf16.mxu0 0
      %1249 = vmatmul.mubr.bf16.gmra.mxu0 %v956
      %v1250 = vpop.f32.mrf.mxu0
      %v1251 = vadd.f32 0.0, %v1250
      %v1252 = vpop.f32.mrf.mxu0
      %v1253 = vpop.f32.mrf.mxu0
      %v1254 = vadd.f32 0.0, %v1253
      %v1255 = vpop.f32.mrf.mxu0
      %1256 = vmatprep.mubr.bf16.mxu0 0
      %1257 = vmatmul.mubr.bf16.gmra.mxu0 %v959
      %v1258 = vpop.f32.mrf.mxu0
      %v1259 = vadd.f32 0.0, %v1258
      %v1260 = vpop.f32.mrf.mxu0
      %v1261 = vpop.f32.mrf.mxu0
      %v1262 = vadd.f32 0.0, %v1261
      %v1263 = vpop.f32.mrf.mxu0
      %1264 = vmatprep.mubr.bf16.mxu0 0
      %1265 = vmatmul.mubr.bf16.gmra.mxu0 %v962
      %v1266 = vpop.f32.mrf.mxu0
      %v1267 = vadd.f32 0.0, %v1266
      %v1268 = vpop.f32.mrf.mxu0
      %v1269 = vpop.f32.mrf.mxu0
      %v1270 = vadd.f32 0.0, %v1269
      %v1271 = vpop.f32.mrf.mxu0
      %1272 = vmatprep.mubr.bf16.mxu0 0
      %1273 = vmatmul.mubr.bf16.gmra.mxu0 %v965
      %v1274 = vpop.f32.mrf.mxu0
      %v1275 = vadd.f32 0.0, %v1274
      %v1276 = vpop.f32.mrf.mxu0
      %v1277 = vpop.f32.mrf.mxu0
      %v1278 = vadd.f32 0.0, %v1277
      %v1279 = vpop.f32.mrf.mxu0
      %1280 = vmatprep.mubr.bf16.mxu0 0
      %1281 = vmatmul.mubr.bf16.gmra.mxu0 %v968
      %v1282 = vpop.f32.mrf.mxu0
      %v1283 = vadd.f32 0.0, %v1282
      %v1284 = vpop.f32.mrf.mxu0
      %v1285 = vpop.f32.mrf.mxu0
      %v1286 = vadd.f32 0.0, %v1285
      %v1287 = vpop.f32.mrf.mxu0
      %1288 = vmatprep.mubr.bf16.mxu0 0
      %1289 = vmatmul.mubr.bf16.gmra.mxu0 %v971
      %v1290 = vpop.f32.mrf.mxu0
      %v1291 = vadd.f32 0.0, %v1290
      %v1292 = vpop.f32.mrf.mxu0
      %v1293 = vpop.f32.mrf.mxu0
      %v1294 = vadd.f32 0.0, %v1293
      %v1295 = vpop.f32.mrf.mxu0
      %1296 = vmatprep.mubr.bf16.mxu0 0
      %1297 = vmatmul.mubr.bf16.gmra.mxu0 %v974
      %v1298 = vpop.f32.mrf.mxu0
      %v1299 = vadd.f32 0.0, %v1298
      %v1300 = vpop.f32.mrf.mxu0
      %v1301 = vpop.f32.mrf.mxu0
      %v1302 = vadd.f32 0.0, %v1301
      %v1303 = vpop.f32.mrf.mxu0
      %1304 = vmatprep.mubr.bf16.mxu0 0
      %1305 = vmatmul.mubr.bf16.gmra.mxu0 %v977
      %v1306 = vpop.f32.mrf.mxu0
      %v1307 = vadd.f32 0.0, %v1306
      %v1308 = vpop.f32.mrf.mxu0
      %v1309 = vpop.f32.mrf.mxu0
      %v1310 = vadd.f32 0.0, %v1309
      %v1311 = vpop.f32.mrf.mxu0
      %1312 = vmatprep.mubr.bf16.mxu0 0
      %1313 = vmatmul.mubr.bf16.gmra.mxu0 %v980
      %v1314 = vpop.f32.mrf.mxu0
      %v1315 = vadd.f32 0.0, %v1314
      %v1316 = vpop.f32.mrf.mxu0
      %v1317 = vpop.f32.mrf.mxu0
      %v1318 = vadd.f32 0.0, %v1317
      %v1319 = vpop.f32.mrf.mxu0
      %1320 = vmatprep.mubr.bf16.mxu0 0
      %1321 = vmatmul.mubr.bf16.gmra.mxu0 %v983
      %v1322 = vpop.f32.mrf.mxu0
      %v1323 = vadd.f32 0.0, %v1322
      %v1324 = vpop.f32.mrf.mxu0
      %v1325 = vpop.f32.mrf.mxu0
      %v1326 = vadd.f32 0.0, %v1325
      %v1327 = vpop.f32.mrf.mxu0
      %1328 = vmatprep.mubr.bf16.mxu0 0
      %1329 = vmatmul.mubr.bf16.gmra.mxu0 %v986
      %v1330 = vpop.f32.mrf.mxu0
      %v1331 = vadd.f32 0.0, %v1330
      %v1332 = vpop.f32.mrf.mxu0
      %v1333 = vpop.f32.mrf.mxu0
      %v1334 = vadd.f32 0.0, %v1333
      %v1335 = vpop.f32.mrf.mxu0
      %1336 = vmatprep.mubr.bf16.mxu0 0
      %1337 = vmatmul.mubr.bf16.gmra.mxu0 %v989
      %v1338 = vpop.f32.mrf.mxu0
      %v1339 = vadd.f32 0.0, %v1338
      %v1340 = vpop.f32.mrf.mxu0
      %v1341 = vpop.f32.mrf.mxu0
      %v1342 = vadd.f32 0.0, %v1341
      %v1343 = vpop.f32.mrf.mxu0
      %1344 = vmatprep.mubr.bf16.mxu0 0
      %1345 = vmatmul.mubr.bf16.gmra.mxu0 %v992
      %v1346 = vpop.f32.mrf.mxu0
      %v1347 = vadd.f32 0.0, %v1346
      %v1348 = vpop.f32.mrf.mxu0
      %v1349 = vpop.f32.mrf.mxu0
      %v1350 = vadd.f32 0.0, %v1349
      %v1351 = vpop.f32.mrf.mxu0
      %1352 = vmatprep.mubr.bf16.mxu0 0
      %1353 = vmatmul.mubr.bf16.gmra.mxu0 %v1195
      %v1354 = vpop.f32.mrf.mxu0
      %v1355 = vadd.f32 0.0, %v1354
      %v1356 = vpop.f32.mrf.mxu0
      %v1357 = vpop.f32.mrf.mxu0
      %v1358 = vadd.f32 0.0, %v1357
      %v1359 = vpop.f32.mrf.mxu0
      %1360 = vdwg.mxu0
      %v1361 = vadd.f32 %v1158, %v1235
      %v1362 = vadd.f32 %v1159, %v1238
      %v1363 = vadd.f32 %v1160, %v1243
      %v1364 = vadd.f32 %v1161, %v1246
      %v1365 = vadd.f32 %v1162, %v1251
      %v1366 = vadd.f32 %v1163, %v1254
      %v1367 = vadd.f32 %v1164, %v1259
      %v1368 = vadd.f32 %v1165, %v1262
      %v1369 = vadd.f32 %v1166, %v1267
      %v1370 = vadd.f32 %v1167, %v1270
      %v1371 = vadd.f32 %v1168, %v1275
      %v1372 = vadd.f32 %v1169, %v1278
      %v1373 = vadd.f32 %v1170, %v1283
      %v1374 = vadd.f32 %v1171, %v1286
      %v1375 = vadd.f32 %v1172, %v1291
      %v1376 = vadd.f32 %v1173, %v1294
      %v1377 = vadd.f32 %v1174, %v1299
      %v1378 = vadd.f32 %v1175, %v1302
      %v1379 = vadd.f32 %v1176, %v1307
      %v1380 = vadd.f32 %v1177, %v1310
      %v1381 = vadd.f32 %v1178, %v1315
      %v1382 = vadd.f32 %v1179, %v1318
      %v1383 = vadd.f32 %v1180, %v1323
      %v1384 = vadd.f32 %v1181, %v1326
      %v1385 = vadd.f32 %v1182, %v1331
      %v1386 = vadd.f32 %v1183, %v1334
      %v1387 = vadd.f32 %v1184, %v1339
      %v1388 = vadd.f32 %v1185, %v1342
      %v1389 = vadd.f32 %v1186, %v1347
      %v1390 = vadd.f32 %v1187, %v1350
      %v1391 = vadd.f32 %v1188, %v1355
      %v1392 = vadd.f32 %v1189, %v1358
      %s1393 = scalar_lea.vmem %s2, 16
      %v1394 = vld [vmem:[%s1393] sm:$0xf]
      %vm1395 = vsmask.f32 6400
      %v1396 = vrot.slane %v380, 1
      %v1397 = vrot.slane %v376, 2
      %v1398 = vor.u32 %v1396, %v1397
      %v1399 = vrot.slane %v388, 1
      %v1400 = vrot.slane %v384, 2
      %v1401 = vor.u32 %v1399, %v1400
      %v1402 = vsel %vm1395, %v1398, %v1401
      %v1403 = vrot.slane %v396, 1
      %v1404 = vrot.slane %v392, 2
      %v1405 = vor.u32 %v1403, %v1404
      %v1406 = vsel %vm1395, %v1401, %v1405
      %v1407 = vrot.slane %v404, 1
      %v1408 = vrot.slane %v400, 2
      %v1409 = vor.u32 %v1407, %v1408
      %v1410 = vsel %vm1395, %v1405, %v1409
      %v1411 = vrot.slane %v412, 1
      %v1412 = vrot.slane %v408, 2
      %v1413 = vor.u32 %v1411, %v1412
      %v1414 = vsel %vm1395, %v1409, %v1413
      %v1415 = vrot.slane %v420, 1
      %v1416 = vrot.slane %v416, 2
      %v1417 = vor.u32 %v1415, %v1416
      %v1418 = vsel %vm1395, %v1413, %v1417
      %v1419 = vrot.slane %v428, 1
      %v1420 = vrot.slane %v424, 2
      %v1421 = vor.u32 %v1419, %v1420
      %v1422 = vsel %vm1395, %v1417, %v1421
      %v1423 = vrot.slane %v436, 1
      %v1424 = vrot.slane %v432, 2
      %v1425 = vor.u32 %v1423, %v1424
      %v1426 = vsel %vm1395, %v1421, %v1425
      %v1427 = vrot.slane %v444, 1
      %v1428 = vrot.slane %v440, 2
      %v1429 = vor.u32 %v1427, %v1428
      %v1430 = vsel %vm1395, %v1425, %v1429
      %v1431 = vrot.slane %v452, 1
      %v1432 = vrot.slane %v448, 2
      %v1433 = vor.u32 %v1431, %v1432
      %v1434 = vsel %vm1395, %v1429, %v1433
      %v1435 = vrot.slane %v460, 1
      %v1436 = vrot.slane %v456, 2
      %v1437 = vor.u32 %v1435, %v1436
      %v1438 = vsel %vm1395, %v1433, %v1437
      %v1439 = vrot.slane %v468, 1
      %v1440 = vrot.slane %v464, 2
      %v1441 = vor.u32 %v1439, %v1440
      %v1442 = vsel %vm1395, %v1437, %v1441
      %v1443 = vrot.slane %v476, 1
      %v1444 = vrot.slane %v472, 2
      %v1445 = vor.u32 %v1443, %v1444
      %v1446 = vsel %vm1395, %v1441, %v1445
      %v1447 = vrot.slane %v484, 1
      %v1448 = vrot.slane %v480, 2
      %v1449 = vor.u32 %v1447, %v1448
      %v1450 = vsel %vm1395, %v1445, %v1449
      %v1451 = vrot.slane %v492, 1
      %v1452 = vrot.slane %v488, 2
      %v1453 = vor.u32 %v1451, %v1452
      %v1454 = vsel %vm1395, %v1449, %v1453
      %v1455 = vshrl.u32 %v361, 16
      %v1457 = vrot.slane %v1455, 1
      %v1458 = vrot.slane %v496, 2
      %v1459 = vor.u32 %v1457, %v1458
      %v1460 = vsel %vm1395, %v1453, %v1459
      %v1462 = vshrl.u32 %v362, 16
      %v1464 = vrot.slane %v1462, 1
      %v1465 = vshll.u32 %v362, 16
      %v1467 = vrot.slane %v1465, 2
      %v1468 = vor.u32 %v1464, %v1467
      %v1469 = vsel %vm1395, %v1459, %v1468
      %v1471 = vsel %vm500, %v1402, 0
      %v1474 = vsel %vm500, %v1406, 0
      %v1477 = vsel %vm500, %v1410, 0
      %v1480 = vsel %vm500, %v1414, 0
      %v1483 = vsel %vm500, %v1418, 0
      %v1486 = vsel %vm500, %v1422, 0
      %v1489 = vsel %vm500, %v1426, 0
      %v1492 = vsel %vm500, %v1430, 0
      %v1495 = vsel %vm500, %v1434, 0
      %v1498 = vsel %vm500, %v1438, 0
      %v1501 = vsel %vm500, %v1442, 0
      %v1504 = vsel %vm500, %v1446, 0
      %v1507 = vsel %vm500, %v1450, 0
      %v1510 = vsel %vm500, %v1454, 0
      %v1513 = vsel %vm500, %v1460, 0
      %v1516 = vsel %vm500, %v1469, 0
      %v1519 = vsel %vm549, %v1394, 0
      %1521 = vmatprep.subr.bf16.mxu0 0
      %1522 = vmatpush1.bf16.msra.mxu0 0
      %1523 = vmatprep.subr.bf16.mxu0 0
      %1524 = vmatpush1.bf16.msra.mxu0 0
      %1525 = vmatprep.subr.bf16.mxu0 0
      %1526 = vmatpush1.bf16.msra.mxu0 0
      %1527 = vmatprep.subr.bf16.mxu0 0
      %1528 = vmatpush1.bf16.msra.mxu0 0
      %1529 = vmatprep.subr.bf16.mxu0 0
      %1530 = vmatpush1.bf16.msra.mxu0 0
      %1531 = vmatprep.subr.bf16.mxu0 0
      %1532 = vmatpush1.bf16.msra.mxu0 0
      %1533 = vmatprep.subr.bf16.mxu0 0
      %1534 = vmatpush1.bf16.msra.mxu0 0
      %1535 = vmatprep.subr.bf16.mxu0 0
      %1536 = vmatpush1.bf16.msra.mxu0 %v1519
      %1537 = vmatprep.subr.bf16.mxu0 0
      %1538 = vmatpush2.bf16.msra.mxu0 0
      %1539 = vmatprep.subr.bf16.mxu0 0
      %1540 = vmatpush2.bf16.msra.mxu0 0
      %1541 = vmatprep.subr.bf16.mxu0 0
      %1542 = vmatpush2.bf16.msra.mxu0 0
      %1543 = vmatprep.subr.bf16.mxu0 0
      %1544 = vmatpush2.bf16.msra.mxu0 0
      %1545 = vmatprep.subr.bf16.mxu0 0
      %1546 = vmatpush2.bf16.msra.mxu0 0
      %1547 = vmatprep.subr.bf16.mxu0 0
      %1548 = vmatpush2.bf16.msra.mxu0 0
      %1549 = vmatprep.subr.bf16.mxu0 0
      %1550 = vmatpush2.bf16.msra.mxu0 0
      %1551 = vmatprep.subr.bf16.mxu0 0
      %1552 = vmatpush2.bf16.msra.mxu0 0
      %1553 = vmatprep.mubr.bf16.mxu0 0
      %1554 = vmatmul.mubr.bf16.gmra.mxu0 %v1471
      %v1555 = vpop.f32.mrf.mxu0
      %v1556 = vadd.f32 0.0, %v1555
      %v1557 = vpop.f32.mrf.mxu0
      %v1558 = vpop.f32.mrf.mxu0
      %v1559 = vadd.f32 0.0, %v1558
      %v1560 = vpop.f32.mrf.mxu0
      %1561 = vmatprep.mubr.bf16.mxu0 0
      %1562 = vmatmul.mubr.bf16.gmra.mxu0 %v1474
      %v1563 = vpop.f32.mrf.mxu0
      %v1564 = vadd.f32 0.0, %v1563
      %v1565 = vpop.f32.mrf.mxu0
      %v1566 = vpop.f32.mrf.mxu0
      %v1567 = vadd.f32 0.0, %v1566
      %v1568 = vpop.f32.mrf.mxu0
      %1569 = vmatprep.mubr.bf16.mxu0 0
      %1570 = vmatmul.mubr.bf16.gmra.mxu0 %v1477
      %v1571 = vpop.f32.mrf.mxu0
      %v1572 = vadd.f32 0.0, %v1571
      %v1573 = vpop.f32.mrf.mxu0
      %v1574 = vpop.f32.mrf.mxu0
      %v1575 = vadd.f32 0.0, %v1574
      %v1576 = vpop.f32.mrf.mxu0
      %1577 = vmatprep.mubr.bf16.mxu0 0
      %1578 = vmatmul.mubr.bf16.gmra.mxu0 %v1480
      %v1579 = vpop.f32.mrf.mxu0
      %v1580 = vadd.f32 0.0, %v1579
      %v1581 = vpop.f32.mrf.mxu0
      %v1582 = vpop.f32.mrf.mxu0
      %v1583 = vadd.f32 0.0, %v1582
      %v1584 = vpop.f32.mrf.mxu0
      %1585 = vmatprep.mubr.bf16.mxu0 0
      %1586 = vmatmul.mubr.bf16.gmra.mxu0 %v1483
      %v1587 = vpop.f32.mrf.mxu0
      %v1588 = vadd.f32 0.0, %v1587
      %v1589 = vpop.f32.mrf.mxu0
      %v1590 = vpop.f32.mrf.mxu0
      %v1591 = vadd.f32 0.0, %v1590
      %v1592 = vpop.f32.mrf.mxu0
      %1593 = vmatprep.mubr.bf16.mxu0 0
      %1594 = vmatmul.mubr.bf16.gmra.mxu0 %v1486
      %v1595 = vpop.f32.mrf.mxu0
      %v1596 = vadd.f32 0.0, %v1595
      %v1597 = vpop.f32.mrf.mxu0
      %v1598 = vpop.f32.mrf.mxu0
      %v1599 = vadd.f32 0.0, %v1598
      %v1600 = vpop.f32.mrf.mxu0
      %1601 = vmatprep.mubr.bf16.mxu0 0
      %1602 = vmatmul.mubr.bf16.gmra.mxu0 %v1489
      %v1603 = vpop.f32.mrf.mxu0
      %v1604 = vadd.f32 0.0, %v1603
      %v1605 = vpop.f32.mrf.mxu0
      %v1606 = vpop.f32.mrf.mxu0
      %v1607 = vadd.f32 0.0, %v1606
      %v1608 = vpop.f32.mrf.mxu0
      %1609 = vmatprep.mubr.bf16.mxu0 0
      %1610 = vmatmul.mubr.bf16.gmra.mxu0 %v1492
      %v1611 = vpop.f32.mrf.mxu0
      %v1612 = vadd.f32 0.0, %v1611
      %v1613 = vpop.f32.mrf.mxu0
      %v1614 = vpop.f32.mrf.mxu0
      %v1615 = vadd.f32 0.0, %v1614
      %v1616 = vpop.f32.mrf.mxu0
      %1617 = vmatprep.mubr.bf16.mxu0 0
      %1618 = vmatmul.mubr.bf16.gmra.mxu0 %v1495
      %v1619 = vpop.f32.mrf.mxu0
      %v1620 = vadd.f32 0.0, %v1619
      %v1621 = vpop.f32.mrf.mxu0
      %v1622 = vpop.f32.mrf.mxu0
      %v1623 = vadd.f32 0.0, %v1622
      %v1624 = vpop.f32.mrf.mxu0
      %1625 = vmatprep.mubr.bf16.mxu0 0
      %1626 = vmatmul.mubr.bf16.gmra.mxu0 %v1498
      %v1627 = vpop.f32.mrf.mxu0
      %v1628 = vadd.f32 0.0, %v1627
      %v1629 = vpop.f32.mrf.mxu0
      %v1630 = vpop.f32.mrf.mxu0
      %v1631 = vadd.f32 0.0, %v1630
      %v1632 = vpop.f32.mrf.mxu0
      %1633 = vmatprep.mubr.bf16.mxu0 0
      %1634 = vmatmul.mubr.bf16.gmra.mxu0 %v1501
      %v1635 = vpop.f32.mrf.mxu0
      %v1636 = vadd.f32 0.0, %v1635
      %v1637 = vpop.f32.mrf.mxu0
      %v1638 = vpop.f32.mrf.mxu0
      %v1639 = vadd.f32 0.0, %v1638
      %v1640 = vpop.f32.mrf.mxu0
      %1641 = vmatprep.mubr.bf16.mxu0 0
      %1642 = vmatmul.mubr.bf16.gmra.mxu0 %v1504
      %v1643 = vpop.f32.mrf.mxu0
      %v1644 = vadd.f32 0.0, %v1643
      %v1645 = vpop.f32.mrf.mxu0
      %v1646 = vpop.f32.mrf.mxu0
      %v1647 = vadd.f32 0.0, %v1646
      %v1648 = vpop.f32.mrf.mxu0
      %1649 = vmatprep.mubr.bf16.mxu0 0
      %1650 = vmatmul.mubr.bf16.gmra.mxu0 %v1507
      %v1651 = vpop.f32.mrf.mxu0
      %v1652 = vadd.f32 0.0, %v1651
      %v1653 = vpop.f32.mrf.mxu0
      %v1654 = vpop.f32.mrf.mxu0
      %v1655 = vadd.f32 0.0, %v1654
      %v1656 = vpop.f32.mrf.mxu0
      %1657 = vmatprep.mubr.bf16.mxu0 0
      %1658 = vmatmul.mubr.bf16.gmra.mxu0 %v1510
      %v1659 = vpop.f32.mrf.mxu0
      %v1660 = vadd.f32 0.0, %v1659
      %v1661 = vpop.f32.mrf.mxu0
      %v1662 = vpop.f32.mrf.mxu0
      %v1663 = vadd.f32 0.0, %v1662
      %v1664 = vpop.f32.mrf.mxu0
      %1665 = vmatprep.mubr.bf16.mxu0 0
      %1666 = vmatmul.mubr.bf16.gmra.mxu0 %v1513
      %v1667 = vpop.f32.mrf.mxu0
      %v1668 = vadd.f32 0.0, %v1667
      %v1669 = vpop.f32.mrf.mxu0
      %v1670 = vpop.f32.mrf.mxu0
      %v1671 = vadd.f32 0.0, %v1670
      %v1672 = vpop.f32.mrf.mxu0
      %1673 = vmatprep.mubr.bf16.mxu0 0
      %1674 = vmatmul.mubr.bf16.gmra.mxu0 %v1516
      %v1675 = vpop.f32.mrf.mxu0
      %v1676 = vadd.f32 0.0, %v1675
      %v1677 = vpop.f32.mrf.mxu0
      %v1678 = vpop.f32.mrf.mxu0
      %v1679 = vadd.f32 0.0, %v1678
      %v1680 = vpop.f32.mrf.mxu0
      %1681 = vdwg.mxu0
      %v1682 = vadd.f32 %v1361, %v1556
      %v1683 = vadd.f32 %v1362, %v1559
      %v1684 = vadd.f32 %v1363, %v1564
      %v1685 = vadd.f32 %v1364, %v1567
      %v1686 = vadd.f32 %v1365, %v1572
      %v1687 = vadd.f32 %v1366, %v1575
      %v1688 = vadd.f32 %v1367, %v1580
      %v1689 = vadd.f32 %v1368, %v1583
      %v1690 = vadd.f32 %v1369, %v1588
      %v1691 = vadd.f32 %v1370, %v1591
      %v1692 = vadd.f32 %v1371, %v1596
      %v1693 = vadd.f32 %v1372, %v1599
      %v1694 = vadd.f32 %v1373, %v1604
      %v1695 = vadd.f32 %v1374, %v1607
      %v1696 = vadd.f32 %v1375, %v1612
      %v1697 = vadd.f32 %v1376, %v1615
      %v1698 = vadd.f32 %v1377, %v1620
      %v1699 = vadd.f32 %v1378, %v1623
      %v1700 = vadd.f32 %v1379, %v1628
      %v1701 = vadd.f32 %v1380, %v1631
      %v1702 = vadd.f32 %v1381, %v1636
      %v1703 = vadd.f32 %v1382, %v1639
      %v1704 = vadd.f32 %v1383, %v1644
      %v1705 = vadd.f32 %v1384, %v1647
      %v1706 = vadd.f32 %v1385, %v1652
      %v1707 = vadd.f32 %v1386, %v1655
      %v1708 = vadd.f32 %v1387, %v1660
      %v1709 = vadd.f32 %v1388, %v1663
      %v1710 = vadd.f32 %v1389, %v1668
      %v1711 = vadd.f32 %v1390, %v1671
      %v1712 = vadd.f32 %v1391, %v1676
      %v1713 = vadd.f32 %v1392, %v1679
      %s1714 = scalar_lea.vmem %s2, 20
      %v1715 = vld [vmem:[%s1714] sm:$0xf]
      %vm1716 = vcmask 1045504
      %v1717 = vrot.slane %v334, 2
      %v1718 = vrot.slane %v335, 2
      %v1719 = vsel %vm1716, %v1717, %v1718
      %v1720 = vrot.slane %v336, 2
      %v1721 = vsel %vm1716, %v1718, %v1720
      %v1722 = vrot.slane %v337, 2
      %v1723 = vsel %vm1716, %v1720, %v1722
      %v1724 = vrot.slane %v338, 2
      %v1725 = vsel %vm1716, %v1722, %v1724
      %v1726 = vrot.slane %v339, 2
      %v1727 = vsel %vm1716, %v1724, %v1726
      %v1728 = vrot.slane %v340, 2
      %v1729 = vsel %vm1716, %v1726, %v1728
      %v1730 = vrot.slane %v341, 2
      %v1731 = vsel %vm1716, %v1728, %v1730
      %v1732 = vrot.slane %v342, 2
      %v1733 = vsel %vm1716, %v1730, %v1732
      %v1734 = vrot.slane %v343, 2
      %v1735 = vsel %vm1716, %v1732, %v1734
      %v1736 = vrot.slane %v344, 2
      %v1737 = vsel %vm1716, %v1734, %v1736
      %v1738 = vrot.slane %v345, 2
      %v1739 = vsel %vm1716, %v1736, %v1738
      %v1740 = vrot.slane %v346, 2
      %v1741 = vsel %vm1716, %v1738, %v1740
      %v1742 = vrot.slane %v347, 2
      %v1743 = vsel %vm1716, %v1740, %v1742
      %v1744 = vrot.slane %v348, 2
      %v1745 = vsel %vm1716, %v1742, %v1744
      %v1746 = vrot.slane %v361, 2
      %v1747 = vsel %vm1716, %v1744, %v1746
      %v1748 = vrot.slane %v362, 2
      %v1749 = vsel %vm1716, %v1746, %v1748
      %v1751 = vsel %vm500, %v1719, 0
      %v1754 = vsel %vm500, %v1721, 0
      %v1757 = vsel %vm500, %v1723, 0
      %v1760 = vsel %vm500, %v1725, 0
      %v1763 = vsel %vm500, %v1727, 0
      %v1766 = vsel %vm500, %v1729, 0
      %v1769 = vsel %vm500, %v1731, 0
      %v1772 = vsel %vm500, %v1733, 0
      %v1775 = vsel %vm500, %v1735, 0
      %v1778 = vsel %vm500, %v1737, 0
      %v1781 = vsel %vm500, %v1739, 0
      %v1784 = vsel %vm500, %v1741, 0
      %v1787 = vsel %vm500, %v1743, 0
      %v1790 = vsel %vm500, %v1745, 0
      %v1793 = vsel %vm500, %v1747, 0
      %v1796 = vsel %vm500, %v1749, 0
      %v1799 = vsel %vm549, %v1715, 0
      %1801 = vmatprep.subr.bf16.mxu0 0
      %1802 = vmatpush1.bf16.msra.mxu0 0
      %1803 = vmatprep.subr.bf16.mxu0 0
      %1804 = vmatpush1.bf16.msra.mxu0 0
      %1805 = vmatprep.subr.bf16.mxu0 0
      %1806 = vmatpush1.bf16.msra.mxu0 0
      %1807 = vmatprep.subr.bf16.mxu0 0
      %1808 = vmatpush1.bf16.msra.mxu0 0
      %1809 = vmatprep.subr.bf16.mxu0 0
      %1810 = vmatpush1.bf16.msra.mxu0 0
      %1811 = vmatprep.subr.bf16.mxu0 0
      %1812 = vmatpush1.bf16.msra.mxu0 0
      %1813 = vmatprep.subr.bf16.mxu0 0
      %1814 = vmatpush1.bf16.msra.mxu0 0
      %1815 = vmatprep.subr.bf16.mxu0 0
      %1816 = vmatpush1.bf16.msra.mxu0 %v1799
      %1817 = vmatprep.subr.bf16.mxu0 0
      %1818 = vmatpush2.bf16.msra.mxu0 0
      %1819 = vmatprep.subr.bf16.mxu0 0
      %1820 = vmatpush2.bf16.msra.mxu0 0
      %1821 = vmatprep.subr.bf16.mxu0 0
      %1822 = vmatpush2.bf16.msra.mxu0 0
      %1823 = vmatprep.subr.bf16.mxu0 0
      %1824 = vmatpush2.bf16.msra.mxu0 0
      %1825 = vmatprep.subr.bf16.mxu0 0
      %1826 = vmatpush2.bf16.msra.mxu0 0
      %1827 = vmatprep.subr.bf16.mxu0 0
      %1828 = vmatpush2.bf16.msra.mxu0 0
      %1829 = vmatprep.subr.bf16.mxu0 0
      %1830 = vmatpush2.bf16.msra.mxu0 0
      %1831 = vmatprep.subr.bf16.mxu0 0
      %1832 = vmatpush2.bf16.msra.mxu0 0
      %1833 = vmatprep.mubr.bf16.mxu0 0
      %1834 = vmatmul.mubr.bf16.gmra.mxu0 %v1751
      %v1835 = vpop.f32.mrf.mxu0
      %v1836 = vadd.f32 0.0, %v1835
      %v1837 = vpop.f32.mrf.mxu0
      %v1838 = vpop.f32.mrf.mxu0
      %v1839 = vadd.f32 0.0, %v1838
      %v1840 = vpop.f32.mrf.mxu0
      %1841 = vmatprep.mubr.bf16.mxu0 0
      %1842 = vmatmul.mubr.bf16.gmra.mxu0 %v1754
      %v1843 = vpop.f32.mrf.mxu0
      %v1844 = vadd.f32 0.0, %v1843
      %v1845 = vpop.f32.mrf.mxu0
      %v1846 = vpop.f32.mrf.mxu0
      %v1847 = vadd.f32 0.0, %v1846
      %v1848 = vpop.f32.mrf.mxu0
      %1849 = vmatprep.mubr.bf16.mxu0 0
      %1850 = vmatmul.mubr.bf16.gmra.mxu0 %v1757
      %v1851 = vpop.f32.mrf.mxu0
      %v1852 = vadd.f32 0.0, %v1851
      %v1853 = vpop.f32.mrf.mxu0
      %v1854 = vpop.f32.mrf.mxu0
      %v1855 = vadd.f32 0.0, %v1854
      %v1856 = vpop.f32.mrf.mxu0
      %1857 = vmatprep.mubr.bf16.mxu0 0
      %1858 = vmatmul.mubr.bf16.gmra.mxu0 %v1760
      %v1859 = vpop.f32.mrf.mxu0
      %v1860 = vadd.f32 0.0, %v1859
      %v1861 = vpop.f32.mrf.mxu0
      %v1862 = vpop.f32.mrf.mxu0
      %v1863 = vadd.f32 0.0, %v1862
      %v1864 = vpop.f32.mrf.mxu0
      %1865 = vmatprep.mubr.bf16.mxu0 0
      %1866 = vmatmul.mubr.bf16.gmra.mxu0 %v1763
      %v1867 = vpop.f32.mrf.mxu0
      %v1868 = vadd.f32 0.0, %v1867
      %v1869 = vpop.f32.mrf.mxu0
      %v1870 = vpop.f32.mrf.mxu0
      %v1871 = vadd.f32 0.0, %v1870
      %v1872 = vpop.f32.mrf.mxu0
      %1873 = vmatprep.mubr.bf16.mxu0 0
      %1874 = vmatmul.mubr.bf16.gmra.mxu0 %v1766
      %v1875 = vpop.f32.mrf.mxu0
      %v1876 = vadd.f32 0.0, %v1875
      %v1877 = vpop.f32.mrf.mxu0
      %v1878 = vpop.f32.mrf.mxu0
      %v1879 = vadd.f32 0.0, %v1878
      %v1880 = vpop.f32.mrf.mxu0
      %1881 = vmatprep.mubr.bf16.mxu0 0
      %1882 = vmatmul.mubr.bf16.gmra.mxu0 %v1769
      %v1883 = vpop.f32.mrf.mxu0
      %v1884 = vadd.f32 0.0, %v1883
      %v1885 = vpop.f32.mrf.mxu0
      %v1886 = vpop.f32.mrf.mxu0
      %v1887 = vadd.f32 0.0, %v1886
      %v1888 = vpop.f32.mrf.mxu0
      %1889 = vmatprep.mubr.bf16.mxu0 0
      %1890 = vmatmul.mubr.bf16.gmra.mxu0 %v1772
      %v1891 = vpop.f32.mrf.mxu0
      %v1892 = vadd.f32 0.0, %v1891
      %v1893 = vpop.f32.mrf.mxu0
      %v1894 = vpop.f32.mrf.mxu0
      %v1895 = vadd.f32 0.0, %v1894
      %v1896 = vpop.f32.mrf.mxu0
      %1897 = vmatprep.mubr.bf16.mxu0 0
      %1898 = vmatmul.mubr.bf16.gmra.mxu0 %v1775
      %v1899 = vpop.f32.mrf.mxu0
      %v1900 = vadd.f32 0.0, %v1899
      %v1901 = vpop.f32.mrf.mxu0
      %v1902 = vpop.f32.mrf.mxu0
      %v1903 = vadd.f32 0.0, %v1902
      %v1904 = vpop.f32.mrf.mxu0
      %1905 = vmatprep.mubr.bf16.mxu0 0
      %1906 = vmatmul.mubr.bf16.gmra.mxu0 %v1778
      %v1907 = vpop.f32.mrf.mxu0
      %v1908 = vadd.f32 0.0, %v1907
      %v1909 = vpop.f32.mrf.mxu0
      %v1910 = vpop.f32.mrf.mxu0
      %v1911 = vadd.f32 0.0, %v1910
      %v1912 = vpop.f32.mrf.mxu0
      %1913 = vmatprep.mubr.bf16.mxu0 0
      %1914 = vmatmul.mubr.bf16.gmra.mxu0 %v1781
      %v1915 = vpop.f32.mrf.mxu0
      %v1916 = vadd.f32 0.0, %v1915
      %v1917 = vpop.f32.mrf.mxu0
      %v1918 = vpop.f32.mrf.mxu0
      %v1919 = vadd.f32 0.0, %v1918
      %v1920 = vpop.f32.mrf.mxu0
      %1921 = vmatprep.mubr.bf16.mxu0 0
      %1922 = vmatmul.mubr.bf16.gmra.mxu0 %v1784
      %v1923 = vpop.f32.mrf.mxu0
      %v1924 = vadd.f32 0.0, %v1923
      %v1925 = vpop.f32.mrf.mxu0
      %v1926 = vpop.f32.mrf.mxu0
      %v1927 = vadd.f32 0.0, %v1926
      %v1928 = vpop.f32.mrf.mxu0
      %1929 = vmatprep.mubr.bf16.mxu0 0
      %1930 = vmatmul.mubr.bf16.gmra.mxu0 %v1787
      %v1931 = vpop.f32.mrf.mxu0
      %v1932 = vadd.f32 0.0, %v1931
      %v1933 = vpop.f32.mrf.mxu0
      %v1934 = vpop.f32.mrf.mxu0
      %v1935 = vadd.f32 0.0, %v1934
      %v1936 = vpop.f32.mrf.mxu0
      %1937 = vmatprep.mubr.bf16.mxu0 0
      %1938 = vmatmul.mubr.bf16.gmra.mxu0 %v1790
      %v1939 = vpop.f32.mrf.mxu0
      %v1940 = vadd.f32 0.0, %v1939
      %v1941 = vpop.f32.mrf.mxu0
      %v1942 = vpop.f32.mrf.mxu0
      %v1943 = vadd.f32 0.0, %v1942
      %v1944 = vpop.f32.mrf.mxu0
      %1945 = vmatprep.mubr.bf16.mxu0 0
      %1946 = vmatmul.mubr.bf16.gmra.mxu0 %v1793
      %v1947 = vpop.f32.mrf.mxu0
      %v1948 = vadd.f32 0.0, %v1947
      %v1949 = vpop.f32.mrf.mxu0
      %v1950 = vpop.f32.mrf.mxu0
      %v1951 = vadd.f32 0.0, %v1950
      %v1952 = vpop.f32.mrf.mxu0
      %1953 = vmatprep.mubr.bf16.mxu0 0
      %1954 = vmatmul.mubr.bf16.gmra.mxu0 %v1796
      %v1955 = vpop.f32.mrf.mxu0
      %v1956 = vadd.f32 0.0, %v1955
      %v1957 = vpop.f32.mrf.mxu0
      %v1958 = vpop.f32.mrf.mxu0
      %v1959 = vadd.f32 0.0, %v1958
      %v1960 = vpop.f32.mrf.mxu0
      %1961 = vdwg.mxu0
      %v1962 = vadd.f32 %v1682, %v1836
      %v1963 = vadd.f32 %v1683, %v1839
      %v1964 = vadd.f32 %v1684, %v1844
      %v1965 = vadd.f32 %v1685, %v1847
      %v1966 = vadd.f32 %v1686, %v1852
      %v1967 = vadd.f32 %v1687, %v1855
      %v1968 = vadd.f32 %v1688, %v1860
      %v1969 = vadd.f32 %v1689, %v1863
      %v1970 = vadd.f32 %v1690, %v1868
      %v1971 = vadd.f32 %v1691, %v1871
      %v1972 = vadd.f32 %v1692, %v1876
      %v1973 = vadd.f32 %v1693, %v1879
      %v1974 = vadd.f32 %v1694, %v1884
      %v1975 = vadd.f32 %v1695, %v1887
      %v1976 = vadd.f32 %v1696, %v1892
      %v1977 = vadd.f32 %v1697, %v1895
      %v1978 = vadd.f32 %v1698, %v1900
      %v1979 = vadd.f32 %v1699, %v1903
      %v1980 = vadd.f32 %v1700, %v1908
      %v1981 = vadd.f32 %v1701, %v1911
      %v1982 = vadd.f32 %v1702, %v1916
      %v1983 = vadd.f32 %v1703, %v1919
      %v1984 = vadd.f32 %v1704, %v1924
      %v1985 = vadd.f32 %v1705, %v1927
      %v1986 = vadd.f32 %v1706, %v1932
      %v1987 = vadd.f32 %v1707, %v1935
      %v1988 = vadd.f32 %v1708, %v1940
      %v1989 = vadd.f32 %v1709, %v1943
      %v1990 = vadd.f32 %v1710, %v1948
      %v1991 = vadd.f32 %v1711, %v1951
      %v1992 = vadd.f32 %v1712, %v1956
      %v1993 = vadd.f32 %v1713, %v1959
      %s1994 = scalar_lea.vmem %s2, 24
      %v1995 = vld [vmem:[%s1994] sm:$0xf]
      %v1996 = vrot.slane %v363, 2
      %v1997 = vsel %vm1716, %v1748, %v1996
      %v1999 = vsel %vm500, %v1997, 0
      %v2002 = vsel %vm549, %v1995, 0
      %2004 = vmatprep.subr.bf16.mxu0 0
      %2005 = vmatpush1.bf16.msra.mxu0 0
      %2006 = vmatprep.subr.bf16.mxu0 0
      %2007 = vmatpush1.bf16.msra.mxu0 0
      %2008 = vmatprep.subr.bf16.mxu0 0
      %2009 = vmatpush1.bf16.msra.mxu0 0
      %2010 = vmatprep.subr.bf16.mxu0 0
      %2011 = vmatpush1.bf16.msra.mxu0 0
      %2012 = vmatprep.subr.bf16.mxu0 0
      %2013 = vmatpush1.bf16.msra.mxu0 0
      %2014 = vmatprep.subr.bf16.mxu0 0
      %2015 = vmatpush1.bf16.msra.mxu0 0
      %2016 = vmatprep.subr.bf16.mxu0 0
      %2017 = vmatpush1.bf16.msra.mxu0 0
      %2018 = vmatprep.subr.bf16.mxu0 0
      %2019 = vmatpush1.bf16.msra.mxu0 %v2002
      %2020 = vmatprep.subr.bf16.mxu0 0
      %2021 = vmatpush2.bf16.msra.mxu0 0
      %2022 = vmatprep.subr.bf16.mxu0 0
      %2023 = vmatpush2.bf16.msra.mxu0 0
      %2024 = vmatprep.subr.bf16.mxu0 0
      %2025 = vmatpush2.bf16.msra.mxu0 0
      %2026 = vmatprep.subr.bf16.mxu0 0
      %2027 = vmatpush2.bf16.msra.mxu0 0
      %2028 = vmatprep.subr.bf16.mxu0 0
      %2029 = vmatpush2.bf16.msra.mxu0 0
      %2030 = vmatprep.subr.bf16.mxu0 0
      %2031 = vmatpush2.bf16.msra.mxu0 0
      %2032 = vmatprep.subr.bf16.mxu0 0
      %2033 = vmatpush2.bf16.msra.mxu0 0
      %2034 = vmatprep.subr.bf16.mxu0 0
      %2035 = vmatpush2.bf16.msra.mxu0 0
      %2036 = vmatprep.mubr.bf16.mxu0 0
      %2037 = vmatmul.mubr.bf16.gmra.mxu0 %v1754
      %v2038 = vpop.f32.mrf.mxu0
      %v2039 = vadd.f32 0.0, %v2038
      %v2040 = vpop.f32.mrf.mxu0
      %v2041 = vpop.f32.mrf.mxu0
      %v2042 = vadd.f32 0.0, %v2041
      %v2043 = vpop.f32.mrf.mxu0
      %2044 = vmatprep.mubr.bf16.mxu0 0
      %2045 = vmatmul.mubr.bf16.gmra.mxu0 %v1757
      %v2046 = vpop.f32.mrf.mxu0
      %v2047 = vadd.f32 0.0, %v2046
      %v2048 = vpop.f32.mrf.mxu0
      %v2049 = vpop.f32.mrf.mxu0
      %v2050 = vadd.f32 0.0, %v2049
      %v2051 = vpop.f32.mrf.mxu0
      %2052 = vmatprep.mubr.bf16.mxu0 0
      %2053 = vmatmul.mubr.bf16.gmra.mxu0 %v1760
      %v2054 = vpop.f32.mrf.mxu0
      %v2055 = vadd.f32 0.0, %v2054
      %v2056 = vpop.f32.mrf.mxu0
      %v2057 = vpop.f32.mrf.mxu0
      %v2058 = vadd.f32 0.0, %v2057
      %v2059 = vpop.f32.mrf.mxu0
      %2060 = vmatprep.mubr.bf16.mxu0 0
      %2061 = vmatmul.mubr.bf16.gmra.mxu0 %v1763
      %v2062 = vpop.f32.mrf.mxu0
      %v2063 = vadd.f32 0.0, %v2062
      %v2064 = vpop.f32.mrf.mxu0
      %v2065 = vpop.f32.mrf.mxu0
      %v2066 = vadd.f32 0.0, %v2065
      %v2067 = vpop.f32.mrf.mxu0
      %2068 = vmatprep.mubr.bf16.mxu0 0
      %2069 = vmatmul.mubr.bf16.gmra.mxu0 %v1766
      %v2070 = vpop.f32.mrf.mxu0
      %v2071 = vadd.f32 0.0, %v2070
      %v2072 = vpop.f32.mrf.mxu0
      %v2073 = vpop.f32.mrf.mxu0
      %v2074 = vadd.f32 0.0, %v2073
      %v2075 = vpop.f32.mrf.mxu0
      %2076 = vmatprep.mubr.bf16.mxu0 0
      %2077 = vmatmul.mubr.bf16.gmra.mxu0 %v1769
      %v2078 = vpop.f32.mrf.mxu0
      %v2079 = vadd.f32 0.0, %v2078
      %v2080 = vpop.f32.mrf.mxu0
      %v2081 = vpop.f32.mrf.mxu0
      %v2082 = vadd.f32 0.0, %v2081
      %v2083 = vpop.f32.mrf.mxu0
      %2084 = vmatprep.mubr.bf16.mxu0 0
      %2085 = vmatmul.mubr.bf16.gmra.mxu0 %v1772
      %v2086 = vpop.f32.mrf.mxu0
      %v2087 = vadd.f32 0.0, %v2086
      %v2088 = vpop.f32.mrf.mxu0
      %v2089 = vpop.f32.mrf.mxu0
      %v2090 = vadd.f32 0.0, %v2089
      %v2091 = vpop.f32.mrf.mxu0
      %2092 = vmatprep.mubr.bf16.mxu0 0
      %2093 = vmatmul.mubr.bf16.gmra.mxu0 %v1775
      %v2094 = vpop.f32.mrf.mxu0
      %v2095 = vadd.f32 0.0, %v2094
      %v2096 = vpop.f32.mrf.mxu0
      %v2097 = vpop.f32.mrf.mxu0
      %v2098 = vadd.f32 0.0, %v2097
      %v2099 = vpop.f32.mrf.mxu0
      %2100 = vmatprep.mubr.bf16.mxu0 0
      %2101 = vmatmul.mubr.bf16.gmra.mxu0 %v1778
      %v2102 = vpop.f32.mrf.mxu0
      %v2103 = vadd.f32 0.0, %v2102
      %v2104 = vpop.f32.mrf.mxu0
      %v2105 = vpop.f32.mrf.mxu0
      %v2106 = vadd.f32 0.0, %v2105
      %v2107 = vpop.f32.mrf.mxu0
      %2108 = vmatprep.mubr.bf16.mxu0 0
      %2109 = vmatmul.mubr.bf16.gmra.mxu0 %v1781
      %v2110 = vpop.f32.mrf.mxu0
      %v2111 = vadd.f32 0.0, %v2110
      %v2112 = vpop.f32.mrf.mxu0
      %v2113 = vpop.f32.mrf.mxu0
      %v2114 = vadd.f32 0.0, %v2113
      %v2115 = vpop.f32.mrf.mxu0
      %2116 = vmatprep.mubr.bf16.mxu0 0
      %2117 = vmatmul.mubr.bf16.gmra.mxu0 %v1784
      %v2118 = vpop.f32.mrf.mxu0
      %v2119 = vadd.f32 0.0, %v2118
      %v2120 = vpop.f32.mrf.mxu0
      %v2121 = vpop.f32.mrf.mxu0
      %v2122 = vadd.f32 0.0, %v2121
      %v2123 = vpop.f32.mrf.mxu0
      %2124 = vmatprep.mubr.bf16.mxu0 0
      %2125 = vmatmul.mubr.bf16.gmra.mxu0 %v1787
      %v2126 = vpop.f32.mrf.mxu0
      %v2127 = vadd.f32 0.0, %v2126
      %v2128 = vpop.f32.mrf.mxu0
      %v2129 = vpop.f32.mrf.mxu0
      %v2130 = vadd.f32 0.0, %v2129
      %v2131 = vpop.f32.mrf.mxu0
      %2132 = vmatprep.mubr.bf16.mxu0 0
      %2133 = vmatmul.mubr.bf16.gmra.mxu0 %v1790
      %v2134 = vpop.f32.mrf.mxu0
      %v2135 = vadd.f32 0.0, %v2134
      %v2136 = vpop.f32.mrf.mxu0
      %v2137 = vpop.f32.mrf.mxu0
      %v2138 = vadd.f32 0.0, %v2137
      %v2139 = vpop.f32.mrf.mxu0
      %2140 = vmatprep.mubr.bf16.mxu0 0
      %2141 = vmatmul.mubr.bf16.gmra.mxu0 %v1793
      %v2142 = vpop.f32.mrf.mxu0
      %v2143 = vadd.f32 0.0, %v2142
      %v2144 = vpop.f32.mrf.mxu0
      %v2145 = vpop.f32.mrf.mxu0
      %v2146 = vadd.f32 0.0, %v2145
      %v2147 = vpop.f32.mrf.mxu0
      %2148 = vmatprep.mubr.bf16.mxu0 0
      %2149 = vmatmul.mubr.bf16.gmra.mxu0 %v1796
      %v2150 = vpop.f32.mrf.mxu0
      %v2151 = vadd.f32 0.0, %v2150
      %v2152 = vpop.f32.mrf.mxu0
      %v2153 = vpop.f32.mrf.mxu0
      %v2154 = vadd.f32 0.0, %v2153
      %v2155 = vpop.f32.mrf.mxu0
      %2156 = vmatprep.mubr.bf16.mxu0 0
      %2157 = vmatmul.mubr.bf16.gmra.mxu0 %v1999
      %v2158 = vpop.f32.mrf.mxu0
      %v2159 = vadd.f32 0.0, %v2158
      %v2160 = vpop.f32.mrf.mxu0
      %v2161 = vpop.f32.mrf.mxu0
      %v2162 = vadd.f32 0.0, %v2161
      %v2163 = vpop.f32.mrf.mxu0
      %2164 = vdwg.mxu0
      %v2165 = vadd.f32 %v1962, %v2039
      %v2166 = vadd.f32 %v1963, %v2042
      %v2167 = vadd.f32 %v1964, %v2047
      %v2168 = vadd.f32 %v1965, %v2050
      %v2169 = vadd.f32 %v1966, %v2055
      %v2170 = vadd.f32 %v1967, %v2058
      %v2171 = vadd.f32 %v1968, %v2063
      %v2172 = vadd.f32 %v1969, %v2066
      %v2173 = vadd.f32 %v1970, %v2071
      %v2174 = vadd.f32 %v1971, %v2074
      %v2175 = vadd.f32 %v1972, %v2079
      %v2176 = vadd.f32 %v1973, %v2082
      %v2177 = vadd.f32 %v1974, %v2087
      %v2178 = vadd.f32 %v1975, %v2090
      %v2179 = vadd.f32 %v1976, %v2095
      %v2180 = vadd.f32 %v1977, %v2098
      %v2181 = vadd.f32 %v1978, %v2103
      %v2182 = vadd.f32 %v1979, %v2106
      %v2183 = vadd.f32 %v1980, %v2111
      %v2184 = vadd.f32 %v1981, %v2114
      %v2185 = vadd.f32 %v1982, %v2119
      %v2186 = vadd.f32 %v1983, %v2122
      %v2187 = vadd.f32 %v1984, %v2127
      %v2188 = vadd.f32 %v1985, %v2130
      %v2189 = vadd.f32 %v1986, %v2135
      %v2190 = vadd.f32 %v1987, %v2138
      %v2191 = vadd.f32 %v1988, %v2143
      %v2192 = vadd.f32 %v1989, %v2146
      %v2193 = vadd.f32 %v1990, %v2151
      %v2194 = vadd.f32 %v1991, %v2154
      %v2195 = vadd.f32 %v1992, %v2159
      %v2196 = vadd.f32 %v1993, %v2162
      %s2197 = scalar_lea.vmem %s2, 28
      %v2198 = vld [vmem:[%s2197] sm:$0xf]
      %vm2199 = vsmask.f32 5376
      %v2200 = vrot.slane %v388, 2
      %v2201 = vrot.slane %v384, 3
      %v2202 = vor.u32 %v2200, %v2201
      %v2203 = vrot.slane %v396, 2
      %v2204 = vrot.slane %v392, 3
      %v2205 = vor.u32 %v2203, %v2204
      %v2206 = vsel %vm2199, %v2202, %v2205
      %v2207 = vrot.slane %v404, 2
      %v2208 = vrot.slane %v400, 3
      %v2209 = vor.u32 %v2207, %v2208
      %v2210 = vsel %vm2199, %v2205, %v2209
      %v2211 = vrot.slane %v412, 2
      %v2212 = vrot.slane %v408, 3
      %v2213 = vor.u32 %v2211, %v2212
      %v2214 = vsel %vm2199, %v2209, %v2213
      %v2215 = vrot.slane %v420, 2
      %v2216 = vrot.slane %v416, 3
      %v2217 = vor.u32 %v2215, %v2216
      %v2218 = vsel %vm2199, %v2213, %v2217
      %v2219 = vrot.slane %v428, 2
      %v2220 = vrot.slane %v424, 3
      %v2221 = vor.u32 %v2219, %v2220
      %v2222 = vsel %vm2199, %v2217, %v2221
      %v2223 = vrot.slane %v436, 2
      %v2224 = vrot.slane %v432, 3
      %v2225 = vor.u32 %v2223, %v2224
      %v2226 = vsel %vm2199, %v2221, %v2225
      %v2227 = vrot.slane %v444, 2
      %v2228 = vrot.slane %v440, 3
      %v2229 = vor.u32 %v2227, %v2228
      %v2230 = vsel %vm2199, %v2225, %v2229
      %v2231 = vrot.slane %v452, 2
      %v2232 = vrot.slane %v448, 3
      %v2233 = vor.u32 %v2231, %v2232
      %v2234 = vsel %vm2199, %v2229, %v2233
      %v2235 = vrot.slane %v460, 2
      %v2236 = vrot.slane %v456, 3
      %v2237 = vor.u32 %v2235, %v2236
      %v2238 = vsel %vm2199, %v2233, %v2237
      %v2239 = vrot.slane %v468, 2
      %v2240 = vrot.slane %v464, 3
      %v2241 = vor.u32 %v2239, %v2240
      %v2242 = vsel %vm2199, %v2237, %v2241
      %v2243 = vrot.slane %v476, 2
      %v2244 = vrot.slane %v472, 3
      %v2245 = vor.u32 %v2243, %v2244
      %v2246 = vsel %vm2199, %v2241, %v2245
      %v2247 = vrot.slane %v484, 2
      %v2248 = vrot.slane %v480, 3
      %v2249 = vor.u32 %v2247, %v2248
      %v2250 = vsel %vm2199, %v2245, %v2249
      %v2251 = vrot.slane %v492, 2
      %v2252 = vrot.slane %v488, 3
      %v2253 = vor.u32 %v2251, %v2252
      %v2254 = vsel %vm2199, %v2249, %v2253
      %v2255 = vrot.slane %v1455, 2
      %v2256 = vrot.slane %v496, 3
      %v2257 = vor.u32 %v2255, %v2256
      %v2258 = vsel %vm2199, %v2253, %v2257
      %v2259 = vrot.slane %v1462, 2
      %v2260 = vrot.slane %v1465, 3
      %v2261 = vor.u32 %v2259, %v2260
      %v2262 = vsel %vm2199, %v2257, %v2261
      %v2264 = vshrl.u32 %v363, 16
      %v2266 = vrot.slane %v2264, 2
      %v2267 = vshll.u32 %v363, 16
      %v2269 = vrot.slane %v2267, 3
      %v2270 = vor.u32 %v2266, %v2269
      %v2271 = vsel %vm2199, %v2261, %v2270
      %v2273 = vsel %vm500, %v2206, 0
      %v2276 = vsel %vm500, %v2210, 0
      %v2279 = vsel %vm500, %v2214, 0
      %v2282 = vsel %vm500, %v2218, 0
      %v2285 = vsel %vm500, %v2222, 0
      %v2288 = vsel %vm500, %v2226, 0
      %v2291 = vsel %vm500, %v2230, 0
      %v2294 = vsel %vm500, %v2234, 0
      %v2297 = vsel %vm500, %v2238, 0
      %v2300 = vsel %vm500, %v2242, 0
      %v2303 = vsel %vm500, %v2246, 0
      %v2306 = vsel %vm500, %v2250, 0
      %v2309 = vsel %vm500, %v2254, 0
      %v2312 = vsel %vm500, %v2258, 0
      %v2315 = vsel %vm500, %v2262, 0
      %v2318 = vsel %vm500, %v2271, 0
      %v2321 = vsel %vm549, %v2198, 0
      %2323 = vmatprep.subr.bf16.mxu0 0
      %2324 = vmatpush1.bf16.msra.mxu0 0
      %2325 = vmatprep.subr.bf16.mxu0 0
      %2326 = vmatpush1.bf16.msra.mxu0 0
      %2327 = vmatprep.subr.bf16.mxu0 0
      %2328 = vmatpush1.bf16.msra.mxu0 0
      %2329 = vmatprep.subr.bf16.mxu0 0
      %2330 = vmatpush1.bf16.msra.mxu0 0
      %2331 = vmatprep.subr.bf16.mxu0 0
      %2332 = vmatpush1.bf16.msra.mxu0 0
      %2333 = vmatprep.subr.bf16.mxu0 0
      %2334 = vmatpush1.bf16.msra.mxu0 0
      %2335 = vmatprep.subr.bf16.mxu0 0
      %2336 = vmatpush1.bf16.msra.mxu0 0
      %2337 = vmatprep.subr.bf16.mxu0 0
      %2338 = vmatpush1.bf16.msra.mxu0 %v2321
      %2339 = vmatprep.subr.bf16.mxu0 0
      %2340 = vmatpush2.bf16.msra.mxu0 0
      %2341 = vmatprep.subr.bf16.mxu0 0
      %2342 = vmatpush2.bf16.msra.mxu0 0
      %2343 = vmatprep.subr.bf16.mxu0 0
      %2344 = vmatpush2.bf16.msra.mxu0 0
      %2345 = vmatprep.subr.bf16.mxu0 0
      %2346 = vmatpush2.bf16.msra.mxu0 0
      %2347 = vmatprep.subr.bf16.mxu0 0
      %2348 = vmatpush2.bf16.msra.mxu0 0
      %2349 = vmatprep.subr.bf16.mxu0 0
      %2350 = vmatpush2.bf16.msra.mxu0 0
      %2351 = vmatprep.subr.bf16.mxu0 0
      %2352 = vmatpush2.bf16.msra.mxu0 0
      %2353 = vmatprep.subr.bf16.mxu0 0
      %2354 = vmatpush2.bf16.msra.mxu0 0
      %2355 = vmatprep.mubr.bf16.mxu0 0
      %2356 = vmatmul.mubr.bf16.gmra.mxu0 %v2273
      %v2357 = vpop.f32.mrf.mxu0
      %v2358 = vadd.f32 0.0, %v2357
      %v2359 = vpop.f32.mrf.mxu0
      %v2360 = vpop.f32.mrf.mxu0
      %v2361 = vadd.f32 0.0, %v2360
      %v2362 = vpop.f32.mrf.mxu0
      %2363 = vmatprep.mubr.bf16.mxu0 0
      %2364 = vmatmul.mubr.bf16.gmra.mxu0 %v2276
      %v2365 = vpop.f32.mrf.mxu0
      %v2366 = vadd.f32 0.0, %v2365
      %v2367 = vpop.f32.mrf.mxu0
      %v2368 = vpop.f32.mrf.mxu0
      %v2369 = vadd.f32 0.0, %v2368
      %v2370 = vpop.f32.mrf.mxu0
      %2371 = vmatprep.mubr.bf16.mxu0 0
      %2372 = vmatmul.mubr.bf16.gmra.mxu0 %v2279
      %v2373 = vpop.f32.mrf.mxu0
      %v2374 = vadd.f32 0.0, %v2373
      %v2375 = vpop.f32.mrf.mxu0
      %v2376 = vpop.f32.mrf.mxu0
      %v2377 = vadd.f32 0.0, %v2376
      %v2378 = vpop.f32.mrf.mxu0
      %2379 = vmatprep.mubr.bf16.mxu0 0
      %2380 = vmatmul.mubr.bf16.gmra.mxu0 %v2282
      %v2381 = vpop.f32.mrf.mxu0
      %v2382 = vadd.f32 0.0, %v2381
      %v2383 = vpop.f32.mrf.mxu0
      %v2384 = vpop.f32.mrf.mxu0
      %v2385 = vadd.f32 0.0, %v2384
      %v2386 = vpop.f32.mrf.mxu0
      %2387 = vmatprep.mubr.bf16.mxu0 0
      %2388 = vmatmul.mubr.bf16.gmra.mxu0 %v2285
      %v2389 = vpop.f32.mrf.mxu0
      %v2390 = vadd.f32 0.0, %v2389
      %v2391 = vpop.f32.mrf.mxu0
      %v2392 = vpop.f32.mrf.mxu0
      %v2393 = vadd.f32 0.0, %v2392
      %v2394 = vpop.f32.mrf.mxu0
      %2395 = vmatprep.mubr.bf16.mxu0 0
      %2396 = vmatmul.mubr.bf16.gmra.mxu0 %v2288
      %v2397 = vpop.f32.mrf.mxu0
      %v2398 = vadd.f32 0.0, %v2397
      %v2399 = vpop.f32.mrf.mxu0
      %v2400 = vpop.f32.mrf.mxu0
      %v2401 = vadd.f32 0.0, %v2400
      %v2402 = vpop.f32.mrf.mxu0
      %2403 = vmatprep.mubr.bf16.mxu0 0
      %2404 = vmatmul.mubr.bf16.gmra.mxu0 %v2291
      %v2405 = vpop.f32.mrf.mxu0
      %v2406 = vadd.f32 0.0, %v2405
      %v2407 = vpop.f32.mrf.mxu0
      %v2408 = vpop.f32.mrf.mxu0
      %v2409 = vadd.f32 0.0, %v2408
      %v2410 = vpop.f32.mrf.mxu0
      %2411 = vmatprep.mubr.bf16.mxu0 0
      %2412 = vmatmul.mubr.bf16.gmra.mxu0 %v2294
      %v2413 = vpop.f32.mrf.mxu0
      %v2414 = vadd.f32 0.0, %v2413
      %v2415 = vpop.f32.mrf.mxu0
      %v2416 = vpop.f32.mrf.mxu0
      %v2417 = vadd.f32 0.0, %v2416
      %v2418 = vpop.f32.mrf.mxu0
      %2419 = vmatprep.mubr.bf16.mxu0 0
      %2420 = vmatmul.mubr.bf16.gmra.mxu0 %v2297
      %v2421 = vpop.f32.mrf.mxu0
      %v2422 = vadd.f32 0.0, %v2421
      %v2423 = vpop.f32.mrf.mxu0
      %v2424 = vpop.f32.mrf.mxu0
      %v2425 = vadd.f32 0.0, %v2424
      %v2426 = vpop.f32.mrf.mxu0
      %2427 = vmatprep.mubr.bf16.mxu0 0
      %2428 = vmatmul.mubr.bf16.gmra.mxu0 %v2300
      %v2429 = vpop.f32.mrf.mxu0
      %v2430 = vadd.f32 0.0, %v2429
      %v2431 = vpop.f32.mrf.mxu0
      %v2432 = vpop.f32.mrf.mxu0
      %v2433 = vadd.f32 0.0, %v2432
      %v2434 = vpop.f32.mrf.mxu0
      %2435 = vmatprep.mubr.bf16.mxu0 0
      %2436 = vmatmul.mubr.bf16.gmra.mxu0 %v2303
      %v2437 = vpop.f32.mrf.mxu0
      %v2438 = vadd.f32 0.0, %v2437
      %v2439 = vpop.f32.mrf.mxu0
      %v2440 = vpop.f32.mrf.mxu0
      %v2441 = vadd.f32 0.0, %v2440
      %v2442 = vpop.f32.mrf.mxu0
      %2443 = vmatprep.mubr.bf16.mxu0 0
      %2444 = vmatmul.mubr.bf16.gmra.mxu0 %v2306
      %v2445 = vpop.f32.mrf.mxu0
      %v2446 = vadd.f32 0.0, %v2445
      %v2447 = vpop.f32.mrf.mxu0
      %v2448 = vpop.f32.mrf.mxu0
      %v2449 = vadd.f32 0.0, %v2448
      %v2450 = vpop.f32.mrf.mxu0
      %2451 = vmatprep.mubr.bf16.mxu0 0
      %2452 = vmatmul.mubr.bf16.gmra.mxu0 %v2309
      %v2453 = vpop.f32.mrf.mxu0
      %v2454 = vadd.f32 0.0, %v2453
      %v2455 = vpop.f32.mrf.mxu0
      %v2456 = vpop.f32.mrf.mxu0
      %v2457 = vadd.f32 0.0, %v2456
      %v2458 = vpop.f32.mrf.mxu0
      %2459 = vmatprep.mubr.bf16.mxu0 0
      %2460 = vmatmul.mubr.bf16.gmra.mxu0 %v2312
      %v2461 = vpop.f32.mrf.mxu0
      %v2462 = vadd.f32 0.0, %v2461
      %v2463 = vpop.f32.mrf.mxu0
      %v2464 = vpop.f32.mrf.mxu0
      %v2465 = vadd.f32 0.0, %v2464
      %v2466 = vpop.f32.mrf.mxu0
      %2467 = vmatprep.mubr.bf16.mxu0 0
      %2468 = vmatmul.mubr.bf16.gmra.mxu0 %v2315
      %v2469 = vpop.f32.mrf.mxu0
      %v2470 = vadd.f32 0.0, %v2469
      %v2471 = vpop.f32.mrf.mxu0
      %v2472 = vpop.f32.mrf.mxu0
      %v2473 = vadd.f32 0.0, %v2472
      %v2474 = vpop.f32.mrf.mxu0
      %2475 = vmatprep.mubr.bf16.mxu0 0
      %2476 = vmatmul.mubr.bf16.gmra.mxu0 %v2318
      %v2477 = vpop.f32.mrf.mxu0
      %v2478 = vadd.f32 0.0, %v2477
      %v2479 = vpop.f32.mrf.mxu0
      %v2480 = vpop.f32.mrf.mxu0
      %v2481 = vadd.f32 0.0, %v2480
      %v2482 = vpop.f32.mrf.mxu0
      %2483 = vdwg.mxu0
      %v2484 = vadd.f32 %v2165, %v2358
      %v2485 = vadd.f32 %v2166, %v2361
      %v2486 = vadd.f32 %v2167, %v2366
      %v2487 = vadd.f32 %v2168, %v2369
      %v2488 = vadd.f32 %v2169, %v2374
      %v2489 = vadd.f32 %v2170, %v2377
      %v2490 = vadd.f32 %v2171, %v2382
      %v2491 = vadd.f32 %v2172, %v2385
      %v2492 = vadd.f32 %v2173, %v2390
      %v2493 = vadd.f32 %v2174, %v2393
      %v2494 = vadd.f32 %v2175, %v2398
      %v2495 = vadd.f32 %v2176, %v2401
      %v2496 = vadd.f32 %v2177, %v2406
      %v2497 = vadd.f32 %v2178, %v2409
      %v2498 = vadd.f32 %v2179, %v2414
      %v2499 = vadd.f32 %v2180, %v2417
      %v2500 = vadd.f32 %v2181, %v2422
      %v2501 = vadd.f32 %v2182, %v2425
      %v2502 = vadd.f32 %v2183, %v2430
      %v2503 = vadd.f32 %v2184, %v2433
      %v2504 = vadd.f32 %v2185, %v2438
      %v2505 = vadd.f32 %v2186, %v2441
      %v2506 = vadd.f32 %v2187, %v2446
      %v2507 = vadd.f32 %v2188, %v2449
      %v2508 = vadd.f32 %v2189, %v2454
      %v2509 = vadd.f32 %v2190, %v2457
      %v2510 = vadd.f32 %v2191, %v2462
      %v2511 = vadd.f32 %v2192, %v2465
      %v2512 = vadd.f32 %v2193, %v2470
      %v2513 = vadd.f32 %v2194, %v2473
      %v2514 = vadd.f32 %v2195, %v2478
      %v2515 = vadd.f32 %v2196, %v2481
      %s2516 = scalar_lea.vmem %s2, 32
      %v2517 = vld [vmem:[%s2516] sm:$0xf]
      %vm2518 = vcmask 1044480
      %v2519 = vrot.slane %v335, 3
      %v2520 = vrot.slane %v336, 3
      %v2521 = vsel %vm2518, %v2519, %v2520
      %v2522 = vrot.slane %v337, 3
      %v2523 = vsel %vm2518, %v2520, %v2522
      %v2524 = vrot.slane %v338, 3
      %v2525 = vsel %vm2518, %v2522, %v2524
      %v2526 = vrot.slane %v339, 3
      %v2527 = vsel %vm2518, %v2524, %v2526
      %v2528 = vrot.slane %v340, 3
      %v2529 = vsel %vm2518, %v2526, %v2528
      %v2530 = vrot.slane %v341, 3
      %v2531 = vsel %vm2518, %v2528, %v2530
      %v2532 = vrot.slane %v342, 3
      %v2533 = vsel %vm2518, %v2530, %v2532
      %v2534 = vrot.slane %v343, 3
      %v2535 = vsel %vm2518, %v2532, %v2534
      %v2536 = vrot.slane %v344, 3
      %v2537 = vsel %vm2518, %v2534, %v2536
      %v2538 = vrot.slane %v345, 3
      %v2539 = vsel %vm2518, %v2536, %v2538
      %v2540 = vrot.slane %v346, 3
      %v2541 = vsel %vm2518, %v2538, %v2540
      %v2542 = vrot.slane %v347, 3
      %v2543 = vsel %vm2518, %v2540, %v2542
      %v2544 = vrot.slane %v348, 3
      %v2545 = vsel %vm2518, %v2542, %v2544
      %v2546 = vrot.slane %v361, 3
      %v2547 = vsel %vm2518, %v2544, %v2546
      %v2548 = vrot.slane %v362, 3
      %v2549 = vsel %vm2518, %v2546, %v2548
      %v2550 = vrot.slane %v363, 3
      %v2551 = vsel %vm2518, %v2548, %v2550
      %v2553 = vsel %vm500, %v2521, 0
      %v2556 = vsel %vm500, %v2523, 0
      %v2559 = vsel %vm500, %v2525, 0
      %v2562 = vsel %vm500, %v2527, 0
      %v2565 = vsel %vm500, %v2529, 0
      %v2568 = vsel %vm500, %v2531, 0
      %v2571 = vsel %vm500, %v2533, 0
      %v2574 = vsel %vm500, %v2535, 0
      %v2577 = vsel %vm500, %v2537, 0
      %v2580 = vsel %vm500, %v2539, 0
      %v2583 = vsel %vm500, %v2541, 0
      %v2586 = vsel %vm500, %v2543, 0
      %v2589 = vsel %vm500, %v2545, 0
      %v2592 = vsel %vm500, %v2547, 0
      %v2595 = vsel %vm500, %v2549, 0
      %v2598 = vsel %vm500, %v2551, 0
      %v2601 = vsel %vm549, %v2517, 0
      %2603 = vmatprep.subr.bf16.mxu0 0
      %2604 = vmatpush1.bf16.msra.mxu0 0
      %2605 = vmatprep.subr.bf16.mxu0 0
      %2606 = vmatpush1.bf16.msra.mxu0 0
      %2607 = vmatprep.subr.bf16.mxu0 0
      %2608 = vmatpush1.bf16.msra.mxu0 0
      %2609 = vmatprep.subr.bf16.mxu0 0
      %2610 = vmatpush1.bf16.msra.mxu0 0
      %2611 = vmatprep.subr.bf16.mxu0 0
      %2612 = vmatpush1.bf16.msra.mxu0 0
      %2613 = vmatprep.subr.bf16.mxu0 0
      %2614 = vmatpush1.bf16.msra.mxu0 0
      %2615 = vmatprep.subr.bf16.mxu0 0
      %2616 = vmatpush1.bf16.msra.mxu0 0
      %2617 = vmatprep.subr.bf16.mxu0 0
      %2618 = vmatpush1.bf16.msra.mxu0 %v2601
      %2619 = vmatprep.subr.bf16.mxu0 0
      %2620 = vmatpush2.bf16.msra.mxu0 0
      %2621 = vmatprep.subr.bf16.mxu0 0
      %2622 = vmatpush2.bf16.msra.mxu0 0
      %2623 = vmatprep.subr.bf16.mxu0 0
      %2624 = vmatpush2.bf16.msra.mxu0 0
      %2625 = vmatprep.subr.bf16.mxu0 0
      %2626 = vmatpush2.bf16.msra.mxu0 0
      %2627 = vmatprep.subr.bf16.mxu0 0
      %2628 = vmatpush2.bf16.msra.mxu0 0
      %2629 = vmatprep.subr.bf16.mxu0 0
      %2630 = vmatpush2.bf16.msra.mxu0 0
      %2631 = vmatprep.subr.bf16.mxu0 0
      %2632 = vmatpush2.bf16.msra.mxu0 0
      %2633 = vmatprep.subr.bf16.mxu0 0
      %2634 = vmatpush2.bf16.msra.mxu0 0
      %2635 = vmatprep.mubr.bf16.mxu0 0
      %2636 = vmatmul.mubr.bf16.gmra.mxu0 %v2553
      %v2637 = vpop.f32.mrf.mxu0
      %v2638 = vadd.f32 0.0, %v2637
      %v2639 = vpop.f32.mrf.mxu0
      %v2640 = vpop.f32.mrf.mxu0
      %v2641 = vadd.f32 0.0, %v2640
      %v2642 = vpop.f32.mrf.mxu0
      %2643 = vmatprep.mubr.bf16.mxu0 0
      %2644 = vmatmul.mubr.bf16.gmra.mxu0 %v2556
      %v2645 = vpop.f32.mrf.mxu0
      %v2646 = vadd.f32 0.0, %v2645
      %v2647 = vpop.f32.mrf.mxu0
      %v2648 = vpop.f32.mrf.mxu0
      %v2649 = vadd.f32 0.0, %v2648
      %v2650 = vpop.f32.mrf.mxu0
      %2651 = vmatprep.mubr.bf16.mxu0 0
      %2652 = vmatmul.mubr.bf16.gmra.mxu0 %v2559
      %v2653 = vpop.f32.mrf.mxu0
      %v2654 = vadd.f32 0.0, %v2653
      %v2655 = vpop.f32.mrf.mxu0
      %v2656 = vpop.f32.mrf.mxu0
      %v2657 = vadd.f32 0.0, %v2656
      %v2658 = vpop.f32.mrf.mxu0
      %2659 = vmatprep.mubr.bf16.mxu0 0
      %2660 = vmatmul.mubr.bf16.gmra.mxu0 %v2562
      %v2661 = vpop.f32.mrf.mxu0
      %v2662 = vadd.f32 0.0, %v2661
      %v2663 = vpop.f32.mrf.mxu0
      %v2664 = vpop.f32.mrf.mxu0
      %v2665 = vadd.f32 0.0, %v2664
      %v2666 = vpop.f32.mrf.mxu0
      %2667 = vmatprep.mubr.bf16.mxu0 0
      %2668 = vmatmul.mubr.bf16.gmra.mxu0 %v2565
      %v2669 = vpop.f32.mrf.mxu0
      %v2670 = vadd.f32 0.0, %v2669
      %v2671 = vpop.f32.mrf.mxu0
      %v2672 = vpop.f32.mrf.mxu0
      %v2673 = vadd.f32 0.0, %v2672
      %v2674 = vpop.f32.mrf.mxu0
      %2675 = vmatprep.mubr.bf16.mxu0 0
      %2676 = vmatmul.mubr.bf16.gmra.mxu0 %v2568
      %v2677 = vpop.f32.mrf.mxu0
      %v2678 = vadd.f32 0.0, %v2677
      %v2679 = vpop.f32.mrf.mxu0
      %v2680 = vpop.f32.mrf.mxu0
      %v2681 = vadd.f32 0.0, %v2680
      %v2682 = vpop.f32.mrf.mxu0
      %2683 = vmatprep.mubr.bf16.mxu0 0
      %2684 = vmatmul.mubr.bf16.gmra.mxu0 %v2571
      %v2685 = vpop.f32.mrf.mxu0
      %v2686 = vadd.f32 0.0, %v2685
      %v2687 = vpop.f32.mrf.mxu0
      %v2688 = vpop.f32.mrf.mxu0
      %v2689 = vadd.f32 0.0, %v2688
      %v2690 = vpop.f32.mrf.mxu0
      %2691 = vmatprep.mubr.bf16.mxu0 0
      %2692 = vmatmul.mubr.bf16.gmra.mxu0 %v2574
      %v2693 = vpop.f32.mrf.mxu0
      %v2694 = vadd.f32 0.0, %v2693
      %v2695 = vpop.f32.mrf.mxu0
      %v2696 = vpop.f32.mrf.mxu0
      %v2697 = vadd.f32 0.0, %v2696
      %v2698 = vpop.f32.mrf.mxu0
      %2699 = vmatprep.mubr.bf16.mxu0 0
      %2700 = vmatmul.mubr.bf16.gmra.mxu0 %v2577
      %v2701 = vpop.f32.mrf.mxu0
      %v2702 = vadd.f32 0.0, %v2701
      %v2703 = vpop.f32.mrf.mxu0
      %v2704 = vpop.f32.mrf.mxu0
      %v2705 = vadd.f32 0.0, %v2704
      %v2706 = vpop.f32.mrf.mxu0
      %2707 = vmatprep.mubr.bf16.mxu0 0
      %2708 = vmatmul.mubr.bf16.gmra.mxu0 %v2580
      %v2709 = vpop.f32.mrf.mxu0
      %v2710 = vadd.f32 0.0, %v2709
      %v2711 = vpop.f32.mrf.mxu0
      %v2712 = vpop.f32.mrf.mxu0
      %v2713 = vadd.f32 0.0, %v2712
      %v2714 = vpop.f32.mrf.mxu0
      %2715 = vmatprep.mubr.bf16.mxu0 0
      %2716 = vmatmul.mubr.bf16.gmra.mxu0 %v2583
      %v2717 = vpop.f32.mrf.mxu0
      %v2718 = vadd.f32 0.0, %v2717
      %v2719 = vpop.f32.mrf.mxu0
      %v2720 = vpop.f32.mrf.mxu0
      %v2721 = vadd.f32 0.0, %v2720
      %v2722 = vpop.f32.mrf.mxu0
      %2723 = vmatprep.mubr.bf16.mxu0 0
      %2724 = vmatmul.mubr.bf16.gmra.mxu0 %v2586
      %v2725 = vpop.f32.mrf.mxu0
      %v2726 = vadd.f32 0.0, %v2725
      %v2727 = vpop.f32.mrf.mxu0
      %v2728 = vpop.f32.mrf.mxu0
      %v2729 = vadd.f32 0.0, %v2728
      %v2730 = vpop.f32.mrf.mxu0
      %2731 = vmatprep.mubr.bf16.mxu0 0
      %2732 = vmatmul.mubr.bf16.gmra.mxu0 %v2589
      %v2733 = vpop.f32.mrf.mxu0
      %v2734 = vadd.f32 0.0, %v2733
      %v2735 = vpop.f32.mrf.mxu0
      %v2736 = vpop.f32.mrf.mxu0
      %v2737 = vadd.f32 0.0, %v2736
      %v2738 = vpop.f32.mrf.mxu0
      %2739 = vmatprep.mubr.bf16.mxu0 0
      %2740 = vmatmul.mubr.bf16.gmra.mxu0 %v2592
      %v2741 = vpop.f32.mrf.mxu0
      %v2742 = vadd.f32 0.0, %v2741
      %v2743 = vpop.f32.mrf.mxu0
      %v2744 = vpop.f32.mrf.mxu0
      %v2745 = vadd.f32 0.0, %v2744
      %v2746 = vpop.f32.mrf.mxu0
      %2747 = vmatprep.mubr.bf16.mxu0 0
      %2748 = vmatmul.mubr.bf16.gmra.mxu0 %v2595
      %v2749 = vpop.f32.mrf.mxu0
      %v2750 = vadd.f32 0.0, %v2749
      %v2751 = vpop.f32.mrf.mxu0
      %v2752 = vpop.f32.mrf.mxu0
      %v2753 = vadd.f32 0.0, %v2752
      %v2754 = vpop.f32.mrf.mxu0
      %2755 = vmatprep.mubr.bf16.mxu0 0
      %2756 = vmatmul.mubr.bf16.gmra.mxu0 %v2598
      %v2757 = vpop.f32.mrf.mxu0
      %v2758 = vadd.f32 0.0, %v2757
      %v2759 = vpop.f32.mrf.mxu0
      %v2760 = vpop.f32.mrf.mxu0
      %v2761 = vadd.f32 0.0, %v2760
      %v2762 = vpop.f32.mrf.mxu0
      %2763 = vdwg.mxu0
      %v2764 = vadd.f32 %v2484, %v2638
      %v2765 = vadd.f32 %v2485, %v2641
      %v2766 = vadd.f32 %v2486, %v2646
      %v2767 = vadd.f32 %v2487, %v2649
      %v2768 = vadd.f32 %v2488, %v2654
      %v2769 = vadd.f32 %v2489, %v2657
      %v2770 = vadd.f32 %v2490, %v2662
      %v2771 = vadd.f32 %v2491, %v2665
      %v2772 = vadd.f32 %v2492, %v2670
      %v2773 = vadd.f32 %v2493, %v2673
      %v2774 = vadd.f32 %v2494, %v2678
      %v2775 = vadd.f32 %v2495, %v2681
      %v2776 = vadd.f32 %v2496, %v2686
      %v2777 = vadd.f32 %v2497, %v2689
      %v2778 = vadd.f32 %v2498, %v2694
      %v2779 = vadd.f32 %v2499, %v2697
      %v2780 = vadd.f32 %v2500, %v2702
      %v2781 = vadd.f32 %v2501, %v2705
      %v2782 = vadd.f32 %v2502, %v2710
      %v2783 = vadd.f32 %v2503, %v2713
      %v2784 = vadd.f32 %v2504, %v2718
      %v2785 = vadd.f32 %v2505, %v2721
      %v2786 = vadd.f32 %v2506, %v2726
      %v2787 = vadd.f32 %v2507, %v2729
      %v2788 = vadd.f32 %v2508, %v2734
      %v2789 = vadd.f32 %v2509, %v2737
      %v2790 = vadd.f32 %v2510, %v2742
      %v2791 = vadd.f32 %v2511, %v2745
      %v2792 = vadd.f32 %v2512, %v2750
      %v2793 = vadd.f32 %v2513, %v2753
      %v2794 = vadd.f32 %v2514, %v2758
      %v2795 = vadd.f32 %v2515, %v2761
      %v2796 = vld [vmem:[%s3] sm:$0x1]
      %v2798 = vlaneseq
      %v2799 = vshrl.u32 %v2798, 7
      %v2800 = vsub.s32 0, %v2799
      %v2801 = vrot.slane %v2796, %v2800
      %v2803 = vadd.f32 %v2764, %v2801
      %v2804 = vadd.f32 %v2765, %v2801
      %v2805 = vadd.f32 %v2766, %v2801
      %v2806 = vadd.f32 %v2767, %v2801
      %v2807 = vadd.f32 %v2768, %v2801
      %v2808 = vadd.f32 %v2769, %v2801
      %v2809 = vadd.f32 %v2770, %v2801
      %v2810 = vadd.f32 %v2771, %v2801
      %v2811 = vadd.f32 %v2772, %v2801
      %v2812 = vadd.f32 %v2773, %v2801
      %v2813 = vadd.f32 %v2774, %v2801
      %v2814 = vadd.f32 %v2775, %v2801
      %v2815 = vadd.f32 %v2776, %v2801
      %v2816 = vadd.f32 %v2777, %v2801
      %v2817 = vadd.f32 %v2778, %v2801
      %v2818 = vadd.f32 %v2779, %v2801
      %v2819 = vadd.f32 %v2780, %v2801
      %v2820 = vadd.f32 %v2781, %v2801
      %v2821 = vadd.f32 %v2782, %v2801
      %v2822 = vadd.f32 %v2783, %v2801
      %v2823 = vadd.f32 %v2784, %v2801
      %v2824 = vadd.f32 %v2785, %v2801
      %v2825 = vadd.f32 %v2786, %v2801
      %v2826 = vadd.f32 %v2787, %v2801
      %v2827 = vadd.f32 %v2788, %v2801
      %v2828 = vadd.f32 %v2789, %v2801
      %v2829 = vadd.f32 %v2790, %v2801
      %v2830 = vadd.f32 %v2791, %v2801
      %v2831 = vadd.f32 %v2792, %v2801
      %v2832 = vadd.f32 %v2793, %v2801
      %v2833 = vadd.f32 %v2794, %v2801
      %v2834 = vadd.f32 %v2795, %v2801
      %v2835 = vpack.c.bf16 %v2804, %v2803
      %v2836 = vpack.c.bf16 %v2806, %v2805
      %v2837 = vpack.c.bf16 %v2808, %v2807
      %v2838 = vpack.c.bf16 %v2810, %v2809
      %v2839 = vpack.c.bf16 %v2812, %v2811
      %v2840 = vpack.c.bf16 %v2814, %v2813
      %v2841 = vpack.c.bf16 %v2816, %v2815
      %v2842 = vpack.c.bf16 %v2818, %v2817
      %v2843 = vpack.c.bf16 %v2820, %v2819
      %v2844 = vpack.c.bf16 %v2822, %v2821
      %v2845 = vpack.c.bf16 %v2824, %v2823
      %v2846 = vpack.c.bf16 %v2826, %v2825
      %v2847 = vpack.c.bf16 %v2828, %v2827
      %v2848 = vpack.c.bf16 %v2830, %v2829
      %v2849 = vpack.c.bf16 %v2832, %v2831
      %v2850 = vpack.c.bf16 %v2834, %v2833
      %v2867 = vunpack.c.l.b16 %v2835
      %v2868 = vunpack.c.h.b16 %v2835
      %v2869 = vunpack.c.l.b16 %v2836
      %v2870 = vunpack.c.h.b16 %v2836
      %v2871 = vunpack.c.l.b16 %v2837
      %v2872 = vunpack.c.h.b16 %v2837
      %v2873 = vunpack.c.l.b16 %v2838
      %v2874 = vunpack.c.h.b16 %v2838
      %v2875 = vunpack.c.l.b16 %v2839
      %v2876 = vunpack.c.h.b16 %v2839
      %v2877 = vunpack.c.l.b16 %v2840
      %v2878 = vunpack.c.h.b16 %v2840
      %v2879 = vunpack.c.l.b16 %v2841
      %v2880 = vunpack.c.h.b16 %v2841
      %v2881 = vunpack.c.l.b16 %v2842
      %v2882 = vunpack.c.h.b16 %v2842
      %v2883 = vunpack.c.l.b16 %v2843
      %v2884 = vunpack.c.h.b16 %v2843
      %v2885 = vunpack.c.l.b16 %v2844
      %v2886 = vunpack.c.h.b16 %v2844
      %v2887 = vunpack.c.l.b16 %v2845
      %v2888 = vunpack.c.h.b16 %v2845
      %v2889 = vunpack.c.l.b16 %v2846
      %v2890 = vunpack.c.h.b16 %v2846
      %v2891 = vunpack.c.l.b16 %v2847
      %v2892 = vunpack.c.h.b16 %v2847
      %v2893 = vunpack.c.l.b16 %v2848
      %v2894 = vunpack.c.h.b16 %v2848
      %v2895 = vunpack.c.l.b16 %v2849
      %v2896 = vunpack.c.h.b16 %v2849
      %v2897 = vunpack.c.l.b16 %v2850
      %v2898 = vunpack.c.h.b16 %v2850
      %v2899 = vpack.c.b16 %v2867, %v2867
      %v2900 = vpack.c.b16 %v2868, %v2868
      %v2901 = vpack.c.b16 %v2869, %v2869
      %v2902 = vpack.c.b16 %v2870, %v2870
      %v2903 = vpack.c.b16 %v2871, %v2871
      %v2904 = vpack.c.b16 %v2872, %v2872
      %v2905 = vpack.c.b16 %v2873, %v2873
      %v2906 = vpack.c.b16 %v2874, %v2874
      %v2907 = vpack.c.b16 %v2875, %v2875
      %v2908 = vpack.c.b16 %v2876, %v2876
      %v2909 = vpack.c.b16 %v2877, %v2877
      %v2910 = vpack.c.b16 %v2878, %v2878
      %v2911 = vpack.c.b16 %v2879, %v2879
      %v2912 = vpack.c.b16 %v2880, %v2880
      %v2913 = vpack.c.b16 %v2881, %v2881
      %v2914 = vpack.c.b16 %v2882, %v2882
      %v2915 = vpack.c.b16 %v2883, %v2883
      %v2916 = vpack.c.b16 %v2884, %v2884
      %v2917 = vpack.c.b16 %v2885, %v2885
      %v2918 = vpack.c.b16 %v2886, %v2886
      %v2919 = vpack.c.b16 %v2887, %v2887
      %v2920 = vpack.c.b16 %v2888, %v2888
      %v2921 = vpack.c.b16 %v2889, %v2889
      %v2922 = vpack.c.b16 %v2890, %v2890
      %v2923 = vpack.c.b16 %v2891, %v2891
      %v2924 = vpack.c.b16 %v2892, %v2892
      %v2925 = vpack.c.b16 %v2893, %v2893
      %v2926 = vpack.c.b16 %v2894, %v2894
      %v2927 = vpack.c.b16 %v2895, %v2895
      %v2928 = vpack.c.b16 %v2896, %v2896
      %v2929 = vpack.c.b16 %v2897, %v2897
      %v2930 = vpack.c.b16 %v2898, %v2898
      %vm2963 = vcmask 257024
      %2964 = vst.msk [vmem:[%s228] sm:$0xf] %vm2963, %v2899
      %2965 = vst.msk [vmem:[%s228 + $0x4] sm:$0xf] %vm2963, %v2900
      %2966 = vst.msk [vmem:[%s228 + $0x8] sm:$0xf] %vm2963, %v2901
      %2967 = vst.msk [vmem:[%s228 + $0xc] sm:$0xf] %vm2963, %v2902
      %2968 = vst.msk [vmem:[%s228 + $0x10] sm:$0xf] %vm2963, %v2903
      %2969 = vst.msk [vmem:[%s228 + $0x14] sm:$0xf] %vm2963, %v2904
      %2970 = vst.msk [vmem:[%s228 + $0x18] sm:$0xf] %vm2963, %v2905
      %2971 = vst.msk [vmem:[%s228 + $0x1c] sm:$0xf] %vm2963, %v2906
      %2972 = vst.msk [vmem:[%s228 + $0x20] sm:$0xf] %vm2963, %v2907
      %2973 = vst.msk [vmem:[%s228 + $0x24] sm:$0xf] %vm2963, %v2908
      %2974 = vst.msk [vmem:[%s228 + $0x28] sm:$0xf] %vm2963, %v2909
      %2975 = vst.msk [vmem:[%s228 + $0x2c] sm:$0xf] %vm2963, %v2910
      %2976 = vst.msk [vmem:[%s228 + $0x30] sm:$0xf] %vm2963, %v2911
      %2977 = vst.msk [vmem:[%s228 + $0x34] sm:$0xf] %vm2963, %v2912
      %2978 = vst.msk [vmem:[%s228 + $0x38] sm:$0xf] %vm2963, %v2913
      %2979 = vst.msk [vmem:[%s228 + $0x3c] sm:$0xf] %vm2963, %v2914
      %2980 = vst.msk [vmem:[%s228 + $0x40] sm:$0xf] %vm2963, %v2915
      %2981 = vst.msk [vmem:[%s228 + $0x44] sm:$0xf] %vm2963, %v2916
      %2982 = vst.msk [vmem:[%s228 + $0x48] sm:$0xf] %vm2963, %v2917
      %2983 = vst.msk [vmem:[%s228 + $0x4c] sm:$0xf] %vm2963, %v2918
      %2984 = vst.msk [vmem:[%s228 + $0x50] sm:$0xf] %vm2963, %v2919
      %2985 = vst.msk [vmem:[%s228 + $0x54] sm:$0xf] %vm2963, %v2920
      %2986 = vst.msk [vmem:[%s228 + $0x58] sm:$0xf] %vm2963, %v2921
      %2987 = vst.msk [vmem:[%s228 + $0x5c] sm:$0xf] %vm2963, %v2922
      %2988 = vst.msk [vmem:[%s228 + $0x60] sm:$0xf] %vm2963, %v2923
      %2989 = vst.msk [vmem:[%s228 + $0x64] sm:$0xf] %vm2963, %v2924
      %2990 = vst.msk [vmem:[%s228 + $0x68] sm:$0xf] %vm2963, %v2925
      %2991 = vst.msk [vmem:[%s228 + $0x6c] sm:$0xf] %vm2963, %v2926
      %2992 = vst.msk [vmem:[%s228 + $0x70] sm:$0xf] %vm2963, %v2927
      %2993 = vst.msk [vmem:[%s228 + $0x74] sm:$0xf] %vm2963, %v2928
      %2994 = vst.msk [vmem:[%s228 + $0x78] sm:$0xf] %vm2963, %v2929
      %2995 = vst.msk [vmem:[%s228 + $0x7c] sm:$0xf] %vm2963, %v2930
      %s2996 = smul.u32 32, %s15
      %p2997 = scmp.lt.s32.totalorder %s2996, 63
      %s2998 = scalar_select %p2997, %s2996, 63
      %s2999 = smul.addr %s2998, 4
      %s3000 = scalar_lea.vmem %s4, %s2999
      // Predicated region
      $region37: #{tpu_custom_call.1} parent=35 // pred_check
        %p3001 = pneg %p129
      $region38: #{tpu_custom_call.1} parent=35 // pred_check_branch
        %3003 = sbr.rel (%p3001) target = $region40
      $region39: #{tpu_custom_call.1} parent=35 // pred_region
        %s3004 = smul.u32 32, %s15
      $region40: #{tpu_custom_call.1} parent=35 // pred_fallthru
        _
    $region36: #{tpu_custom_call.1} parent=5 // pred_fallthru
      _
    %p3005 = scmp.le.s32.totalorder 2, %s10
    // Predicated region
    $region41: #{tpu_custom_call.1} parent=5 // pred_check
      %p3006 = pneg %p3005
    $region42: #{tpu_custom_call.1} parent=5 // pred_check_branch
      %3008 = sbr.rel (%p3006) target = $region44
    $region43: #{tpu_custom_call.1} parent=5 // pred_region
      %s3009 = ssub.s32 %s10, 2
      // Predicated region
      $region45: #{tpu_custom_call.1} parent=43 // pred_check
        %p3010 = pneg %p135
      $region46: #{tpu_custom_call.1} parent=43 // pred_check_branch
        %3012 = sbr.rel (%p3010) target = $region48
      $region47: #{tpu_custom_call.1} parent=43 // pred_region
        %s3013 = smul.u32 32, %s16
        %p3014 = scmp.lt.s32.totalorder %s3013, 63
        %s3015 = scalar_select %p3014, %s3013, 63
        %s3016 = smul.addr %s3015, 4
        %s3017 = scalar_lea.vmem %s4, %s3016
      $region48: #{tpu_custom_call.1} parent=43 // pred_fallthru
        _
    $region44: #{tpu_custom_call.1} parent=5 // pred_fallthru
      _
  $region6: #{tpu_custom_call.1} parent=0 // loop_footer
    %s14 = sadd.s32 1, %s10
  $region7: #{tpu_custom_call.1} parent=0 // loop_footer_branch
    %9 = sbr.rel target = $region3
  $region8: #{tpu_custom_call.1} parent=0 // loop_exit
    _

</llo_original>
